<compile_context>
chip_gen: v5e
topology: v5e:2x2
jax: 0.10.0
libtpu: 0.0.40
codegen_flags: <defaults>
</compile_context>

<pallas_src>
import functools

import jax
import jax.numpy as jnp
from jax.experimental import pallas as pl
from jax.experimental.pallas import tpu as pltpu

HIDDEN = 512


def _vae_kernel(x_ref, eps_ref,
                ew0_ref, ew1_ref, whead_ref,
                dw0_ref, dw1_ref, dwo_ref,
                recon_ref, small_ref, *, latent):
    f32 = jnp.float32
    bf16 = jnp.bfloat16

    x = x_ref[...]          # f32 activations
    eps = eps_ref[...]      # f32

    # ---------------- Encoder MLP (bias=False) ----------------
    # L0 -> ReLU -> Dropout(0.5) [eval: identity] -> L1 -> ReLU
    h = jnp.dot(x.astype(bf16), ew0_ref[...], preferred_element_type=f32)
    h = jnp.maximum(h, 0.0)
    h = jnp.dot(h.astype(bf16), ew1_ref[...], preferred_element_type=f32)
    h = jnp.maximum(h, 0.0)

    # Fused means/log_var heads: single (H, 2*latent) matmul, slice afterwards.
    head = jnp.dot(h.astype(bf16), whead_ref[...], preferred_element_type=f32)
    mu = head[:, :latent]
    lv = head[:, latent:]

    # ---------------- Reparameterization (f32 VPU/EUP) ----------------
    z = eps * jnp.exp(0.5 * lv) + mu

    # ---------------- Decoder MLP (bias=False) ----------------
    d = jnp.dot(z.astype(bf16), dw0_ref[...], preferred_element_type=f32)
    d = jnp.maximum(d, 0.0)
    d = jnp.dot(d.astype(bf16), dw1_ref[...], preferred_element_type=f32)
    d = jnp.maximum(d, 0.0)
    recon = jnp.dot(d.astype(bf16), dwo_ref[...], preferred_element_type=f32)

    recon_ref[...] = recon.astype(recon_ref.dtype)
    # Packed lane-dense small output: [ mu | log_var | z ]
    small_ref[...] = jnp.concatenate([head, z], axis=-1).astype(small_ref.dtype)


def vae_forward(x, eps, params, *, block_b=None):
    """x: (B, x_dim) f32, eps: (B, latent) f32.

    Returns (recon_x, means, log_var, z), matching VAE.forward with conditional=False.
    """
    B, x_dim = x.shape
    latent = eps.shape[1]
    H = params["ew0"].shape[1]

    if block_b is None:
        block_b = min(B, 256)  # fill MXU rows when B is large (256 on v6e/v7x)
    assert B % block_b == 0, "batch must be divisible by the row tile"
    grid = (B // block_b,)

    row_spec = lambda cols: pl.BlockSpec((block_b, cols), lambda i: (i, 0))
    # Weights: full block, constant index_map -> stay VMEM-resident across the grid.
    w_spec = lambda arr: pl.BlockSpec(arr.shape, lambda i: (0, 0))

    weights = (params["ew0"], params["ew1"], params["whead"],
               params["dw0"], params["dw1"], params["dwo"])

    in_specs = [row_spec(x_dim), row_spec(latent)] + [w_spec(w) for w in weights]
    out_shape = (
        jax.ShapeDtypeStruct((B, x_dim), jnp.float32),       # recon_x
        jax.ShapeDtypeStruct((B, 3 * latent), jnp.float32),  # [mu | log_var | z]
    )
    out_specs = (row_spec(x_dim), row_spec(3 * latent))

    flops = 2 * B * (x_dim * H + H * H + H * 2 * latent
                     + latent * H + H * H + H * x_dim)
    bytes_accessed = (sum(w.size * w.dtype.itemsize for w in weights)
                      + (x.size + eps.size) * 4
                      + (B * x_dim + B * 3 * latent) * 4)
    cost = pl.CostEstimate(flops=flops,
                           transcendentals=B * latent,
                           bytes_accessed=bytes_accessed)

    recon, packed = pl.pallas_call(
        functools.partial(_vae_kernel, latent=latent),
        grid=grid,
        in_specs=in_specs,
        out_specs=out_specs,
        out_shape=out_shape,
        compiler_params=pltpu.CompilerParams(
            dimension_semantics=("parallel",)),
        cost_estimate=cost,
    )(x, eps, *weights)

    mu = packed[:, :latent]
    lv = packed[:, latent:2 * latent]
    z = packed[:, 2 * latent:]
    return recon, mu, lv, z


def init_params(key, x_dim, latent_size, hidden=HIDDEN):
    """PyTorch nn.Linear default init (U[-1/sqrt(in), 1/sqrt(in)]), bias=False.

    Weights stored as (in_features, out_features) in bf16; the means/log_var heads
    are fused into a single (hidden, 2*latent) matrix."""
    def linear(k, fan_in, fan_out):
        bound = 1.0 / (fan_in ** 0.5)
        w = jax.random.uniform(k, (fan_in, fan_out), jnp.float32,
                               minval=-bound, maxval=bound)
        return w.astype(jnp.bfloat16)

    keys = jax.random.split(key, 7)
    wmu = linear(keys[2], hidden, latent_size)   # Encoder.linear_means
    wlv = linear(keys[3], hidden, latent_size)   # Encoder.linear_log_var
    return {
        "ew0": linear(keys[0], x_dim, hidden),          # Encoder.MLP.L0
        "ew1": linear(keys[1], hidden, hidden),         # Encoder.MLP.L1
        "whead": jnp.concatenate([wmu, wlv], axis=1),   # fused heads
        "dw0": linear(keys[4], latent_size, hidden),    # Decoder.MLP.L0
        "dw1": linear(keys[5], hidden, hidden),         # Decoder.MLP.L1
        "dwo": linear(keys[6], hidden, x_dim),          # Decoder.MLP.O
    }


def vae_reference(x, eps, p):
    """Pure-JAX reference (same bf16-operand / f32-accumulate recipe)."""
    f32, bf16 = jnp.float32, jnp.bfloat16
    dot = lambda a, w: jnp.dot(a.astype(bf16), w, preferred_element_type=f32)
    latent = eps.shape[1]
    h = jnp.maximum(dot(x, p["ew0"]), 0.0)
    h = jnp.maximum(dot(h, p["ew1"]), 0.0)
    head = dot(h, p["whead"])
    mu, lv = head[:, :latent], head[:, latent:]
    z = eps * jnp.exp(0.5 * lv) + mu
    d = jnp.maximum(dot(z, p["dw0"]), 0.0)
    d = jnp.maximum(dot(d, p["dw1"]), 0.0)
    recon = dot(d, p["dwo"])
    return recon, mu, lv, z


if __name__ == "__main__":
    B = 8
    X_DIM = 32
    LATENT = 16

    key = jax.random.PRNGKey(0)
    k_params, k_x, k_eps = jax.random.split(key, 3)

    params = init_params(k_params, X_DIM, LATENT)
    x = jax.random.normal(k_x, (B, X_DIM), jnp.float32)
    # eps corresponds to torch.randn([batch_size, latent_size]) in VAE.forward;
    # generated deterministically here and passed into the kernel.
    eps = jax.random.normal(k_eps, (B, LATENT), jnp.float32)

    outs = vae_forward(x, eps, params)
    jax.block_until_ready(outs)

    ref = vae_reference(x, eps, params)
    for got, want in zip(outs, ref):
        assert got.shape == want.shape
        assert jnp.max(jnp.abs(got - want)) < 2e-2, "mismatch vs reference"

    print("KERNEL_OK")
</pallas_src>

<mosaic_0001>
module attributes {stable_mosaic.version = 11 : i64} {
  func.func @_vae_kernel(%arg0: i32, %arg1: memref<8x32xf32, #tpu.memory_space<vmem>>, %arg2: memref<8x16xf32, #tpu.memory_space<vmem>>, %arg3: memref<32x512xbf16, #tpu.memory_space<vmem>>, %arg4: memref<512x512xbf16, #tpu.memory_space<vmem>>, %arg5: memref<512x32xbf16, #tpu.memory_space<vmem>>, %arg6: memref<16x512xbf16, #tpu.memory_space<vmem>>, %arg7: memref<512x512xbf16, #tpu.memory_space<vmem>>, %arg8: memref<512x32xbf16, #tpu.memory_space<vmem>>, %arg9: memref<8x32xf32, #tpu.memory_space<vmem>>, %arg10: memref<8x48xf32, #tpu.memory_space<vmem>>) attributes {dimension_semantics = [#tpu.dimension_semantics<parallel>], iteration_bounds = array<i64: 1>, scalar_prefetch = 0 : i64, scratch_operands = 0 : i64, tpu.core_type = #tpu.core_type<tc>, window_params = [{transform_indices = @transform_0, window_bounds = array<i64: 8, 32>}, {transform_indices = @transform_1, window_bounds = array<i64: 8, 16>}, {pipeline_mode = #tpu.pipeline_mode<synchronous>, transform_indices = @transform_2, window_bounds = array<i64: 32, 512>}, {pipeline_mode = #tpu.pipeline_mode<synchronous>, transform_indices = @transform_3, window_bounds = array<i64: 512, 512>}, {pipeline_mode = #tpu.pipeline_mode<synchronous>, transform_indices = @transform_4, window_bounds = array<i64: 512, 32>}, {pipeline_mode = #tpu.pipeline_mode<synchronous>, transform_indices = @transform_5, window_bounds = array<i64: 16, 512>}, {pipeline_mode = #tpu.pipeline_mode<synchronous>, transform_indices = @transform_6, window_bounds = array<i64: 512, 512>}, {pipeline_mode = #tpu.pipeline_mode<synchronous>, transform_indices = @transform_7, window_bounds = array<i64: 512, 32>}, {transform_indices = @transform_8, window_bounds = array<i64: 8, 32>}, {transform_indices = @transform_9, window_bounds = array<i64: 8, 48>}]} {
    %c0 = arith.constant 0 : index
    %c0_0 = arith.constant 0 : index
    %0 = vector.load %arg1[%c0, %c0_0] : memref<8x32xf32, #tpu.memory_space<vmem>>, vector<8x32xf32>
    %c0_1 = arith.constant 0 : index
    %c0_2 = arith.constant 0 : index
    %1 = vector.load %arg2[%c0_1, %c0_2] : memref<8x16xf32, #tpu.memory_space<vmem>>, vector<8x16xf32>
    %2 = arith.truncf %0 : vector<8x32xf32> to vector<8x32xbf16>
    %c0_3 = arith.constant 0 : index
    %c0_4 = arith.constant 0 : index
    %3 = vector.load %arg3[%c0_3, %c0_4] : memref<32x512xbf16, #tpu.memory_space<vmem>>, vector<32x512xbf16>
    %cst = arith.constant dense<0.000000e+00> : vector<8x512xf32>
    %4 = tpu.matmul %2, %3, %cst {dimension_numbers = #tpu.dot_dimension_numbers<[1], [0], [0], [1], [0, 0, 1, 1], [], []>} : vector<8x32xbf16>, vector<32x512xbf16>, vector<8x512xf32> -> vector<8x512xf32>
    %cst_5 = arith.constant 0.000000e+00 : f32
    %5 = vector.broadcast %cst_5 : f32 to vector<8x512xf32>
    %6 = arith.maximumf %4, %5 : vector<8x512xf32>
    %7 = arith.truncf %6 : vector<8x512xf32> to vector<8x512xbf16>
    %c0_6 = arith.constant 0 : index
    %c0_7 = arith.constant 0 : index
    %8 = vector.load %arg4[%c0_6, %c0_7] : memref<512x512xbf16, #tpu.memory_space<vmem>>, vector<512x512xbf16>
    %cst_8 = arith.constant dense<0.000000e+00> : vector<8x512xf32>
    %9 = tpu.matmul %7, %8, %cst_8 {dimension_numbers = #tpu.dot_dimension_numbers<[1], [0], [0], [1], [0, 0, 1, 1], [], []>} : vector<8x512xbf16>, vector<512x512xbf16>, vector<8x512xf32> -> vector<8x512xf32>
    %cst_9 = arith.constant 0.000000e+00 : f32
    %10 = vector.broadcast %cst_9 : f32 to vector<8x512xf32>
    %11 = arith.maximumf %9, %10 : vector<8x512xf32>
    %12 = arith.truncf %11 : vector<8x512xf32> to vector<8x512xbf16>
    %c0_10 = arith.constant 0 : index
    %c0_11 = arith.constant 0 : index
    %13 = vector.load %arg5[%c0_10, %c0_11] : memref<512x32xbf16, #tpu.memory_space<vmem>>, vector<512x32xbf16>
    %cst_12 = arith.constant dense<0.000000e+00> : vector<8x32xf32>
    %14 = tpu.matmul %12, %13, %cst_12 {dimension_numbers = #tpu.dot_dimension_numbers<[1], [0], [0], [1], [0, 0, 1, 1], [], []>} : vector<8x512xbf16>, vector<512x32xbf16>, vector<8x32xf32> -> vector<8x32xf32>
    %15 = vector.extract_strided_slice %14 {offsets = [0, 0], sizes = [8, 16], strides = [1, 1]} : vector<8x32xf32> to vector<8x16xf32>
    %16 = vector.extract_strided_slice %14 {offsets = [0, 16], sizes = [8, 16], strides = [1, 1]} : vector<8x32xf32> to vector<8x16xf32>
    %cst_13 = arith.constant 5.000000e-01 : f32
    %17 = vector.broadcast %cst_13 : f32 to vector<8x16xf32>
    %18 = arith.mulf %17, %16 : vector<8x16xf32>
    %19 = math.exp %18 : vector<8x16xf32>
    %20 = arith.mulf %1, %19 : vector<8x16xf32>
    %21 = arith.addf %20, %15 : vector<8x16xf32>
    %22 = arith.truncf %21 : vector<8x16xf32> to vector<8x16xbf16>
    %c0_14 = arith.constant 0 : index
    %c0_15 = arith.constant 0 : index
    %23 = vector.load %arg6[%c0_14, %c0_15] : memref<16x512xbf16, #tpu.memory_space<vmem>>, vector<16x512xbf16>
    %cst_16 = arith.constant dense<0.000000e+00> : vector<8x512xf32>
    %24 = tpu.matmul %22, %23, %cst_16 {dimension_numbers = #tpu.dot_dimension_numbers<[1], [0], [0], [1], [0, 0, 1, 1], [], []>} : vector<8x16xbf16>, vector<16x512xbf16>, vector<8x512xf32> -> vector<8x512xf32>
    %cst_17 = arith.constant 0.000000e+00 : f32
    %25 = vector.broadcast %cst_17 : f32 to vector<8x512xf32>
    %26 = arith.maximumf %24, %25 : vector<8x512xf32>
    %27 = arith.truncf %26 : vector<8x512xf32> to vector<8x512xbf16>
    %c0_18 = arith.constant 0 : index
    %c0_19 = arith.constant 0 : index
    %28 = vector.load %arg7[%c0_18, %c0_19] : memref<512x512xbf16, #tpu.memory_space<vmem>>, vector<512x512xbf16>
    %cst_20 = arith.constant dense<0.000000e+00> : vector<8x512xf32>
    %29 = tpu.matmul %27, %28, %cst_20 {dimension_numbers = #tpu.dot_dimension_numbers<[1], [0], [0], [1], [0, 0, 1, 1], [], []>} : vector<8x512xbf16>, vector<512x512xbf16>, vector<8x512xf32> -> vector<8x512xf32>
    %cst_21 = arith.constant 0.000000e+00 : f32
    %30 = vector.broadcast %cst_21 : f32 to vector<8x512xf32>
    %31 = arith.maximumf %29, %30 : vector<8x512xf32>
    %32 = arith.truncf %31 : vector<8x512xf32> to vector<8x512xbf16>
    %c0_22 = arith.constant 0 : index
    %c0_23 = arith.constant 0 : index
    %33 = vector.load %arg8[%c0_22, %c0_23] : memref<512x32xbf16, #tpu.memory_space<vmem>>, vector<512x32xbf16>
    %cst_24 = arith.constant dense<0.000000e+00> : vector<8x32xf32>
    %34 = tpu.matmul %32, %33, %cst_24 {dimension_numbers = #tpu.dot_dimension_numbers<[1], [0], [0], [1], [0, 0, 1, 1], [], []>} : vector<8x512xbf16>, vector<512x32xbf16>, vector<8x32xf32> -> vector<8x32xf32>
    %c0_25 = arith.constant 0 : index
    %c0_26 = arith.constant 0 : index
    %35 = vector.load %arg9[%c0_25, %c0_26] : memref<8x32xf32, #tpu.memory_space<vmem>>, vector<8x32xf32>
    tpu.vector_store %arg9[%c0_25, %c0_26], %34 {strides = array<i32>} : memref<8x32xf32, #tpu.memory_space<vmem>>, vector<8x32xf32>,
    %36 = tpu.concatenate %14, %21 in 1 : vector<8x32xf32>, vector<8x16xf32> -> vector<8x48xf32>
    %c0_27 = arith.constant 0 : index
    %c0_28 = arith.constant 0 : index
    %37 = vector.load %arg10[%c0_27, %c0_28] : memref<8x48xf32, #tpu.memory_space<vmem>>, vector<8x48xf32>
    tpu.vector_store %arg10[%c0_27, %c0_28], %36 {strides = array<i32>} : memref<8x48xf32, #tpu.memory_space<vmem>>, vector<8x48xf32>,
    return
  }
  func.func @transform_0(%arg0: i32) -> (i32, i32) {
    %c0_i32 = arith.constant 0 : i32
    %c0_i32_0 = arith.constant 0 : i32
    return %arg0, %c0_i32 : i32, i32
  }
  func.func @transform_1(%arg0: i32) -> (i32, i32) {
    %c0_i32 = arith.constant 0 : i32
    %c0_i32_0 = arith.constant 0 : i32
    return %arg0, %c0_i32 : i32, i32
  }
  func.func @transform_2(%arg0: i32) -> (i32, i32) {
    %c0_i32 = arith.constant 0 : i32
    %c0_i32_0 = arith.constant 0 : i32
    %c0_i32_1 = arith.constant 0 : i32
    return %c0_i32, %c0_i32_0 : i32, i32
  }
  func.func @transform_3(%arg0: i32) -> (i32, i32) {
    %c0_i32 = arith.constant 0 : i32
    %c0_i32_0 = arith.constant 0 : i32
    %c0_i32_1 = arith.constant 0 : i32
    return %c0_i32, %c0_i32_0 : i32, i32
  }
  func.func @transform_4(%arg0: i32) -> (i32, i32) {
    %c0_i32 = arith.constant 0 : i32
    %c0_i32_0 = arith.constant 0 : i32
    %c0_i32_1 = arith.constant 0 : i32
    return %c0_i32, %c0_i32_0 : i32, i32
  }
  func.func @transform_5(%arg0: i32) -> (i32, i32) {
    %c0_i32 = arith.constant 0 : i32
    %c0_i32_0 = arith.constant 0 : i32
    %c0_i32_1 = arith.constant 0 : i32
    return %c0_i32, %c0_i32_0 : i32, i32
  }
  func.func @transform_6(%arg0: i32) -> (i32, i32) {
    %c0_i32 = arith.constant 0 : i32
    %c0_i32_0 = arith.constant 0 : i32
    %c0_i32_1 = arith.constant 0 : i32
    return %c0_i32, %c0_i32_0 : i32, i32
  }
  func.func @transform_7(%arg0: i32) -> (i32, i32) {
    %c0_i32 = arith.constant 0 : i32
    %c0_i32_0 = arith.constant 0 : i32
    %c0_i32_1 = arith.constant 0 : i32
    return %c0_i32, %c0_i32_0 : i32, i32
  }
  func.func @transform_8(%arg0: i32) -> (i32, i32) {
    %c0_i32 = arith.constant 0 : i32
    %c0_i32_0 = arith.constant 0 : i32
    return %arg0, %c0_i32 : i32, i32
  }
  func.func @transform_9(%arg0: i32) -> (i32, i32) {
    %c0_i32 = arith.constant 0 : i32
    %c0_i32_0 = arith.constant 0 : i32
    return %arg0, %c0_i32 : i32, i32
  }
}

</mosaic_0001>

<llo_original>
// kernel: tpu_custom_call.1
$region0: #{tpu_custom_call.1}
  #allocation0 [shape = 'u32[]', space=smem, size = 0x4, offset = 0x4, fixed_abs, tag = 'smem constant byte address 0x4 - core index']
  #allocation1 [shape = 'u32[72,128]{1,0:T(1,128)}', space=vmem, size = 0x9000, scoped, tag = 'internal scratch']
  %s0 = inlined_call_operand.vmem [shape: f32[8,32], index: 0, kind: input, shape index: {}]
  %s1 = inlined_call_operand.vmem [shape: f32[8,16], index: 1, kind: input, shape index: {}]
  %s2 = inlined_call_operand.vmem [shape: bf16[32,512], index: 2, kind: input, shape index: {}]
  %s3 = inlined_call_operand.hbm [shape: bf16[512,512], index: 3, kind: input, shape index: {}]
  %s4 = inlined_call_operand.vmem [shape: bf16[512,32], index: 4, kind: input, shape index: {}]
  %s5 = inlined_call_operand.vmem [shape: bf16[16,512], index: 5, kind: input, shape index: {}]
  %s6 = inlined_call_operand.hbm [shape: bf16[512,512], index: 6, kind: input, shape index: {}]
  %s7 = inlined_call_operand.vmem [shape: bf16[512,32], index: 7, kind: input, shape index: {}]
  %s8 = inlined_call_operand.hbm [shape: f32[8,32], index: 8, kind: output, shape index: {0}]
  %s9 = inlined_call_operand.hbm [shape: f32[8,48], index: 9, kind: output, shape index: {1}]
  %10 = xla_tuple %s8, %s9
  %s11 = sld [smem:[#allocation0]]
  $region58: #{tpu_custom_call.1} parent=0
    _
  %s13 = ssub.s32 1, %s11
  %s14 = scalar_select 0, %s13, %s11
  $region1: #{tpu_custom_call.1} parent=0
    #allocation2 [shape = 'u8[524288]{0}', space=vmem, size = 0x80000, scoped, tag = 'input window, operand 3, single buffered']
    #allocation3 [shape = 's32[1]{0}', space=sflag, size = 0x4, scoped, tag = 'scoped memory for tpu_custom_call.1']
    #allocation4 [shape = 's32[1]{0}', space=sflag, size = 0x4, scoped, tag = 'scoped memory for tpu_custom_call.1']
    #allocation5 [shape = 'u8[524288]{0}', space=vmem, size = 0x80000, scoped, tag = 'input window, operand 6, single buffered']
    #allocation6 [shape = 's32[1]{0}', space=sflag, size = 0x4, scoped, tag = 'scoped memory for tpu_custom_call.1']
    #allocation7 [shape = 'u8[4096]{0}', space=vmem, size = 0x1000, scoped, tag = 'output window, operand 0, single buffered']
    #allocation8 [shape = 'u8[4096]{0}', space=vmem, size = 0x1000, scoped, tag = 'output window, operand 1, single buffered']
    #allocation9 [shape = 's32[1]{0}', space=sflag, size = 0x4, scoped, tag = 'scoped memory for tpu_custom_call.1']
    %15 = vsyncpa [#allocation3], 0
    %16 = vsyncpa [#allocation6], 0
    %17 = vsyncpa [#allocation4], 0
    %18 = vsyncpa [#allocation9], 0
    // Predicated region
    $region2: #{tpu_custom_call.1} parent=1 // pred_check
      _
    $region3: #{tpu_custom_call.1} parent=1 // pred_check_branch
      %20 = sbr.rel (0) target = $region5
    $region4: #{tpu_custom_call.1} parent=1 // pred_region
      _
    $region5: #{tpu_custom_call.1} parent=1 // pred_fallthru
      _
    // Predicated region
    $region6: #{tpu_custom_call.1} parent=1 // pred_check
      _
    $region7: #{tpu_custom_call.1} parent=1 // pred_check_branch
      %22 = sbr.rel (0) target = $region9
    $region8: #{tpu_custom_call.1} parent=1 // pred_region
      _
    $region9: #{tpu_custom_call.1} parent=1 // pred_fallthru
      _
    // Predicated region
    $region10: #{tpu_custom_call.1} parent=1 // pred_check
      _
    $region11: #{tpu_custom_call.1} parent=1 // pred_check_branch
      %24 = sbr.rel (0) target = $region13
    $region12: #{tpu_custom_call.1} parent=1 // pred_region
      _
    $region13: #{tpu_custom_call.1} parent=1 // pred_fallthru
      _
    // Predicated region
    $region14: #{tpu_custom_call.1} parent=1 // pred_check
      _
    $region15: #{tpu_custom_call.1} parent=1 // pred_check_branch
      %26 = sbr.rel (0) target = $region17
    $region16: #{tpu_custom_call.1} parent=1 // pred_region
      %28 = vsyncadd [#allocation3], 0
      %s29 = sshll.u32 %s3, 4
      %s30 = int_to_ptr.hbm [resolvable:$true] %s29
      %s31 = sshll.u32 [#allocation2], 4
      %s32 = int_to_ptr.vmem [resolvable:$true] %s31
      %37 = dma.hbm_to_vmem [thread:$0]  %s30, 16384, %s32, [#allocation3], 256, 256, 16
    $region17: #{tpu_custom_call.1} parent=1 // pred_fallthru
      _
    // Predicated region
    $region18: #{tpu_custom_call.1} parent=1 // pred_check
      _
    $region19: #{tpu_custom_call.1} parent=1 // pred_check_branch
      %39 = sbr.rel (0) target = $region21
    $region20: #{tpu_custom_call.1} parent=1 // pred_region
      _
    $region21: #{tpu_custom_call.1} parent=1 // pred_fallthru
      _
    // Predicated region
    $region22: #{tpu_custom_call.1} parent=1 // pred_check
      _
    $region23: #{tpu_custom_call.1} parent=1 // pred_check_branch
      %41 = sbr.rel (0) target = $region25
    $region24: #{tpu_custom_call.1} parent=1 // pred_region
      _
    $region25: #{tpu_custom_call.1} parent=1 // pred_fallthru
      _
    // Predicated region
    $region26: #{tpu_custom_call.1} parent=1 // pred_check
      _
    $region27: #{tpu_custom_call.1} parent=1 // pred_check_branch
      %43 = sbr.rel (0) target = $region29
    $region28: #{tpu_custom_call.1} parent=1 // pred_region
      %45 = vsyncadd [#allocation6], 0
      %s46 = sshll.u32 %s6, 4
      %s47 = int_to_ptr.hbm [resolvable:$true] %s46
      %s48 = sshll.u32 [#allocation5], 4
      %s49 = int_to_ptr.vmem [resolvable:$true] %s48
      %54 = dma.hbm_to_vmem [thread:$0]  %s47, 16384, %s49, [#allocation6], 256, 256, 16
    $region29: #{tpu_custom_call.1} parent=1 // pred_fallthru
      _
    // Predicated region
    $region30: #{tpu_custom_call.1} parent=1 // pred_check
      _
    $region31: #{tpu_custom_call.1} parent=1 // pred_check_branch
      %56 = sbr.rel (0) target = $region33
    $region32: #{tpu_custom_call.1} parent=1 // pred_region
      _
    $region33: #{tpu_custom_call.1} parent=1 // pred_fallthru
      _
    // Predicated region
    $region34: #{tpu_custom_call.1} parent=1 // pred_check
      _
    $region35: #{tpu_custom_call.1} parent=1 // pred_check_branch
      %58 = sbr.rel (0) target = $region37
    $region36: #{tpu_custom_call.1} parent=1 // pred_region
      %60 = dma.done [#allocation3], 16384
    $region37: #{tpu_custom_call.1} parent=1 // pred_fallthru
      _
    // Predicated region
    $region38: #{tpu_custom_call.1} parent=1 // pred_check
      _
    $region39: #{tpu_custom_call.1} parent=1 // pred_check_branch
      %62 = sbr.rel (0) target = $region41
    $region40: #{tpu_custom_call.1} parent=1 // pred_region
      %64 = dma.done [#allocation6], 16384
    $region41: #{tpu_custom_call.1} parent=1 // pred_fallthru
      _
    %v66 = vld [vmem:[%s0] sm:$0xff]
    %v67 = vld [vmem:[%s1] sm:$0xff]
    %v68 = vpack.c.bf16 %v66, %v66
    %v69 = vld [vmem:[%s2] sm:$0xff]
    %v70 = vld [vmem:[%s2 + $0x8] sm:$0xff]
    %v71 = vld [vmem:[%s2 + $0x10] sm:$0xff]
    %v72 = vld [vmem:[%s2 + $0x18] sm:$0xff]
    %v73 = vld [vmem:[%s2 + $0x20] sm:$0xff]
    %v74 = vld [vmem:[%s2 + $0x28] sm:$0xff]
    %v75 = vld [vmem:[%s2 + $0x30] sm:$0xff]
    %v76 = vld [vmem:[%s2 + $0x38] sm:$0xff]
    %v85 = vunpack.c.l.b16 %v69
    %v86 = vunpack.c.h.b16 %v69
    %v87 = vunpack.c.l.b16 %v70
    %v88 = vunpack.c.h.b16 %v70
    %v89 = vunpack.c.l.b16 %v71
    %v90 = vunpack.c.h.b16 %v71
    %v91 = vunpack.c.l.b16 %v72
    %v92 = vunpack.c.h.b16 %v72
    %v93 = vunpack.c.l.b16 %v73
    %v94 = vunpack.c.h.b16 %v73
    %v95 = vunpack.c.l.b16 %v74
    %v96 = vunpack.c.h.b16 %v74
    %v97 = vunpack.c.l.b16 %v75
    %v98 = vunpack.c.h.b16 %v75
    %v99 = vunpack.c.l.b16 %v76
    %v100 = vunpack.c.h.b16 %v76
    %v101 = vpack.c.b16 %v89, %v85
    %v102 = vpack.c.b16 %v90, %v86
    %v103 = vpack.c.b16 %v91, %v87
    %v104 = vpack.c.b16 %v92, %v88
    %v105 = vpack.c.b16 %v97, %v93
    %v106 = vpack.c.b16 %v98, %v94
    %v107 = vpack.c.b16 %v99, %v95
    %v108 = vpack.c.b16 %v100, %v96
    %vm117 = vcmask 261120
    %v119 = vsel %vm117, %v68, 0
    %121 = vmatpush.bf16.msra.mxu0 0
    %122 = vmatpush.bf16.msra.mxu0 0
    %123 = vmatpush.bf16.msra.mxu0 0
    %124 = vmatpush.bf16.msra.mxu0 0
    %125 = vmatpush.bf16.msra.mxu0 0
    %126 = vmatpush.bf16.msra.mxu0 0
    %127 = vmatpush.bf16.msra.mxu0 %v105
    %128 = vmatpush.bf16.msra.mxu0 %v101
    %129 = vmatmul.bf16.gmra.mxu0 %v119
    %v130 = vpop.f32.mrf.mxu0
    %v131 = vadd.f32 0.0, %v130
    %v132 = vpop.f32.mrf.mxu0
    %133 = vdwg.mxu0
    %134 = vmatpush.bf16.msra.mxu0 0
    %135 = vmatpush.bf16.msra.mxu0 0
    %136 = vmatpush.bf16.msra.mxu0 0
    %137 = vmatpush.bf16.msra.mxu0 0
    %138 = vmatpush.bf16.msra.mxu0 0
    %139 = vmatpush.bf16.msra.mxu0 0
    %140 = vmatpush.bf16.msra.mxu0 %v106
    %141 = vmatpush.bf16.msra.mxu0 %v102
    %142 = vmatmul.bf16.gmra.mxu0 %v119
    %v143 = vpop.f32.mrf.mxu0
    %v144 = vadd.f32 0.0, %v143
    %v145 = vpop.f32.mrf.mxu0
    %146 = vdwg.mxu0
    %147 = vmatpush.bf16.msra.mxu0 0
    %148 = vmatpush.bf16.msra.mxu0 0
    %149 = vmatpush.bf16.msra.mxu0 0
    %150 = vmatpush.bf16.msra.mxu0 0
    %151 = vmatpush.bf16.msra.mxu0 0
    %152 = vmatpush.bf16.msra.mxu0 0
    %153 = vmatpush.bf16.msra.mxu0 %v107
    %154 = vmatpush.bf16.msra.mxu0 %v103
    %155 = vmatmul.bf16.gmra.mxu0 %v119
    %v156 = vpop.f32.mrf.mxu0
    %v157 = vadd.f32 0.0, %v156
    %v158 = vpop.f32.mrf.mxu0
    %159 = vdwg.mxu0
    %160 = vmatpush.bf16.msra.mxu0 0
    %161 = vmatpush.bf16.msra.mxu0 0
    %162 = vmatpush.bf16.msra.mxu0 0
    %163 = vmatpush.bf16.msra.mxu0 0
    %164 = vmatpush.bf16.msra.mxu0 0
    %165 = vmatpush.bf16.msra.mxu0 0
    %166 = vmatpush.bf16.msra.mxu0 %v108
    %167 = vmatpush.bf16.msra.mxu0 %v104
    %168 = vmatmul.bf16.gmra.mxu0 %v119
    %v169 = vpop.f32.mrf.mxu0
    %v170 = vadd.f32 0.0, %v169
    %v171 = vpop.f32.mrf.mxu0
    %172 = vdwg.mxu0
    %v173 = vmax.f32 %v131, 0.0
    %v174 = vmax.f32 %v144, 0.0
    %v175 = vmax.f32 %v157, 0.0
    %v176 = vmax.f32 %v170, 0.0
    %v177 = vpack.c.bf16 %v173, %v173
    %v178 = vpack.c.bf16 %v174, %v174
    %v179 = vpack.c.bf16 %v175, %v175
    %v180 = vpack.c.bf16 %v176, %v176
    %v181 = vld [vmem:[#allocation2] sm:$0xff]
    %v182 = vld [vmem:[#allocation2 + $0x8] sm:$0xff]
    %v183 = vld [vmem:[#allocation2 + $0x10] sm:$0xff]
    %v184 = vld [vmem:[#allocation2 + $0x18] sm:$0xff]
    %v185 = vld [vmem:[#allocation2 + $0x20] sm:$0xff]
    %v186 = vld [vmem:[#allocation2 + $0x28] sm:$0xff]
    %v187 = vld [vmem:[#allocation2 + $0x30] sm:$0xff]
    %v188 = vld [vmem:[#allocation2 + $0x38] sm:$0xff]
    %v189 = vld [vmem:[#allocation2 + $0x40] sm:$0xff]
    %v190 = vld [vmem:[#allocation2 + $0x48] sm:$0xff]
    %v191 = vld [vmem:[#allocation2 + $0x50] sm:$0xff]
    %v192 = vld [vmem:[#allocation2 + $0x58] sm:$0xff]
    %v193 = vld [vmem:[#allocation2 + $0x60] sm:$0xff]
    %v194 = vld [vmem:[#allocation2 + $0x68] sm:$0xff]
    %v195 = vld [vmem:[#allocation2 + $0x70] sm:$0xff]
    %v196 = vld [vmem:[#allocation2 + $0x78] sm:$0xff]
    %v197 = vld [vmem:[#allocation2 + $0x80] sm:$0xff]
    %v198 = vld [vmem:[#allocation2 + $0x88] sm:$0xff]
    %v199 = vld [vmem:[#allocation2 + $0x90] sm:$0xff]
    %v200 = vld [vmem:[#allocation2 + $0x98] sm:$0xff]
    %v201 = vld [vmem:[#allocation2 + $0xa0] sm:$0xff]
    %v202 = vld [vmem:[#allocation2 + $0xa8] sm:$0xff]
    %v203 = vld [vmem:[#allocation2 + $0xb0] sm:$0xff]
    %v204 = vld [vmem:[#allocation2 + $0xb8] sm:$0xff]
    %v205 = vld [vmem:[#allocation2 + $0xc0] sm:$0xff]
    %v206 = vld [vmem:[#allocation2 + $0xc8] sm:$0xff]
    %v207 = vld [vmem:[#allocation2 + $0xd0] sm:$0xff]
    %v208 = vld [vmem:[#allocation2 + $0xd8] sm:$0xff]
    %v209 = vld [vmem:[#allocation2 + $0xe0] sm:$0xff]
    %v210 = vld [vmem:[#allocation2 + $0xe8] sm:$0xff]
    %v211 = vld [vmem:[#allocation2 + $0xf0] sm:$0xff]
    %v212 = vld [vmem:[#allocation2 + $0xf8] sm:$0xff]
    %v213 = vld [vmem:[#allocation2 + $0x100] sm:$0xff]
    %v214 = vld [vmem:[#allocation2 + $0x108] sm:$0xff]
    %v215 = vld [vmem:[#allocation2 + $0x110] sm:$0xff]
    %v216 = vld [vmem:[#allocation2 + $0x118] sm:$0xff]
    %v217 = vld [vmem:[#allocation2 + $0x120] sm:$0xff]
    %v218 = vld [vmem:[#allocation2 + $0x128] sm:$0xff]
    %v219 = vld [vmem:[#allocation2 + $0x130] sm:$0xff]
    %v220 = vld [vmem:[#allocation2 + $0x138] sm:$0xff]
    %v221 = vld [vmem:[#allocation2 + $0x140] sm:$0xff]
    %v222 = vld [vmem:[#allocation2 + $0x148] sm:$0xff]
    %v223 = vld [vmem:[#allocation2 + $0x150] sm:$0xff]
    %v224 = vld [vmem:[#allocation2 + $0x158] sm:$0xff]
    %v225 = vld [vmem:[#allocation2 + $0x160] sm:$0xff]
    %v226 = vld [vmem:[#allocation2 + $0x168] sm:$0xff]
    %v227 = vld [vmem:[#allocation2 + $0x170] sm:$0xff]
    %v228 = vld [vmem:[#allocation2 + $0x178] sm:$0xff]
    %v229 = vld [vmem:[#allocation2 + $0x180] sm:$0xff]
    %v230 = vld [vmem:[#allocation2 + $0x188] sm:$0xff]
    %v231 = vld [vmem:[#allocation2 + $0x190] sm:$0xff]
    %v232 = vld [vmem:[#allocation2 + $0x198] sm:$0xff]
    %v233 = vld [vmem:[#allocation2 + $0x1a0] sm:$0xff]
    %v234 = vld [vmem:[#allocation2 + $0x1a8] sm:$0xff]
    %v235 = vld [vmem:[#allocation2 + $0x1b0] sm:$0xff]
    %v236 = vld [vmem:[#allocation2 + $0x1b8] sm:$0xff]
    %v237 = vld [vmem:[#allocation2 + $0x1c0] sm:$0xff]
    %v238 = vld [vmem:[#allocation2 + $0x1c8] sm:$0xff]
    %v239 = vld [vmem:[#allocation2 + $0x1d0] sm:$0xff]
    %v240 = vld [vmem:[#allocation2 + $0x1d8] sm:$0xff]
    %v241 = vld [vmem:[#allocation2 + $0x1e0] sm:$0xff]
    %v242 = vld [vmem:[#allocation2 + $0x1e8] sm:$0xff]
    %v243 = vld [vmem:[#allocation2 + $0x1f0] sm:$0xff]
    %v244 = vld [vmem:[#allocation2 + $0x1f8] sm:$0xff]
    %v245 = vld [vmem:[#allocation2 + $0x200] sm:$0xff]
    %v246 = vld [vmem:[#allocation2 + $0x208] sm:$0xff]
    %v247 = vld [vmem:[#allocation2 + $0x210] sm:$0xff]
    %v248 = vld [vmem:[#allocation2 + $0x218] sm:$0xff]
    %v249 = vld [vmem:[#allocation2 + $0x220] sm:$0xff]
    %v250 = vld [vmem:[#allocation2 + $0x228] sm:$0xff]
    %v251 = vld [vmem:[#allocation2 + $0x230] sm:$0xff]
    %v252 = vld [vmem:[#allocation2 + $0x238] sm:$0xff]
    %v253 = vld [vmem:[#allocation2 + $0x240] sm:$0xff]
    %v254 = vld [vmem:[#allocation2 + $0x248] sm:$0xff]
    %v255 = vld [vmem:[#allocation2 + $0x250] sm:$0xff]
    %v256 = vld [vmem:[#allocation2 + $0x258] sm:$0xff]
    %v257 = vld [vmem:[#allocation2 + $0x260] sm:$0xff]
    %v258 = vld [vmem:[#allocation2 + $0x268] sm:$0xff]
    %v259 = vld [vmem:[#allocation2 + $0x270] sm:$0xff]
    %v260 = vld [vmem:[#allocation2 + $0x278] sm:$0xff]
    %v261 = vld [vmem:[#allocation2 + $0x280] sm:$0xff]
    %v262 = vld [vmem:[#allocation2 + $0x288] sm:$0xff]
    %v263 = vld [vmem:[#allocation2 + $0x290] sm:$0xff]
    %v264 = vld [vmem:[#allocation2 + $0x298] sm:$0xff]
    %v265 = vld [vmem:[#allocation2 + $0x2a0] sm:$0xff]
    %v266 = vld [vmem:[#allocation2 + $0x2a8] sm:$0xff]
    %v267 = vld [vmem:[#allocation2 + $0x2b0] sm:$0xff]
    %v268 = vld [vmem:[#allocation2 + $0x2b8] sm:$0xff]
    %v269 = vld [vmem:[#allocation2 + $0x2c0] sm:$0xff]
    %v270 = vld [vmem:[#allocation2 + $0x2c8] sm:$0xff]
    %v271 = vld [vmem:[#allocation2 + $0x2d0] sm:$0xff]
    %v272 = vld [vmem:[#allocation2 + $0x2d8] sm:$0xff]
    %v273 = vld [vmem:[#allocation2 + $0x2e0] sm:$0xff]
    %v274 = vld [vmem:[#allocation2 + $0x2e8] sm:$0xff]
    %v275 = vld [vmem:[#allocation2 + $0x2f0] sm:$0xff]
    %v276 = vld [vmem:[#allocation2 + $0x2f8] sm:$0xff]
    %v277 = vld [vmem:[#allocation2 + $0x300] sm:$0xff]
    %v278 = vld [vmem:[#allocation2 + $0x308] sm:$0xff]
    %v279 = vld [vmem:[#allocation2 + $0x310] sm:$0xff]
    %v280 = vld [vmem:[#allocation2 + $0x318] sm:$0xff]
    %v281 = vld [vmem:[#allocation2 + $0x320] sm:$0xff]
    %v282 = vld [vmem:[#allocation2 + $0x328] sm:$0xff]
    %v283 = vld [vmem:[#allocation2 + $0x330] sm:$0xff]
    %v284 = vld [vmem:[#allocation2 + $0x338] sm:$0xff]
    %v285 = vld [vmem:[#allocation2 + $0x340] sm:$0xff]
    %v286 = vld [vmem:[#allocation2 + $0x348] sm:$0xff]
    %v287 = vld [vmem:[#allocation2 + $0x350] sm:$0xff]
    %v288 = vld [vmem:[#allocation2 + $0x358] sm:$0xff]
    %v289 = vld [vmem:[#allocation2 + $0x360] sm:$0xff]
    %v290 = vld [vmem:[#allocation2 + $0x368] sm:$0xff]
    %v291 = vld [vmem:[#allocation2 + $0x370] sm:$0xff]
    %v292 = vld [vmem:[#allocation2 + $0x378] sm:$0xff]
    %v293 = vld [vmem:[#allocation2 + $0x380] sm:$0xff]
    %v294 = vld [vmem:[#allocation2 + $0x388] sm:$0xff]
    %v295 = vld [vmem:[#allocation2 + $0x390] sm:$0xff]
    %v296 = vld [vmem:[#allocation2 + $0x398] sm:$0xff]
    %v297 = vld [vmem:[#allocation2 + $0x3a0] sm:$0xff]
    %v298 = vld [vmem:[#allocation2 + $0x3a8] sm:$0xff]
    %v299 = vld [vmem:[#allocation2 + $0x3b0] sm:$0xff]
    %v300 = vld [vmem:[#allocation2 + $0x3b8] sm:$0xff]
    %v301 = vld [vmem:[#allocation2 + $0x3c0] sm:$0xff]
    %v302 = vld [vmem:[#allocation2 + $0x3c8] sm:$0xff]
    %v303 = vld [vmem:[#allocation2 + $0x3d0] sm:$0xff]
    %v304 = vld [vmem:[#allocation2 + $0x3d8] sm:$0xff]
    %v305 = vld [vmem:[#allocation2 + $0x3e0] sm:$0xff]
    %v306 = vld [vmem:[#allocation2 + $0x3e8] sm:$0xff]
    %v307 = vld [vmem:[#allocation2 + $0x3f0] sm:$0xff]
    %v308 = vld [vmem:[#allocation2 + $0x3f8] sm:$0xff]
    %v437 = vunpack.c.l.b16 %v181
    %v438 = vunpack.c.h.b16 %v181
    %v439 = vunpack.c.l.b16 %v182
    %v440 = vunpack.c.h.b16 %v182
    %v441 = vunpack.c.l.b16 %v183
    %v442 = vunpack.c.h.b16 %v183
    %v443 = vunpack.c.l.b16 %v184
    %v444 = vunpack.c.h.b16 %v184
    %v445 = vunpack.c.l.b16 %v185
    %v446 = vunpack.c.h.b16 %v185
    %v447 = vunpack.c.l.b16 %v186
    %v448 = vunpack.c.h.b16 %v186
    %v449 = vunpack.c.l.b16 %v187
    %v450 = vunpack.c.h.b16 %v187
    %v451 = vunpack.c.l.b16 %v188
    %v452 = vunpack.c.h.b16 %v188
    %v453 = vunpack.c.l.b16 %v189
    %v454 = vunpack.c.h.b16 %v189
    %v455 = vunpack.c.l.b16 %v190
    %v456 = vunpack.c.h.b16 %v190
    %v457 = vunpack.c.l.b16 %v191
    %v458 = vunpack.c.h.b16 %v191
    %v459 = vunpack.c.l.b16 %v192
    %v460 = vunpack.c.h.b16 %v192
    %v461 = vunpack.c.l.b16 %v193
    %v462 = vunpack.c.h.b16 %v193
    %v463 = vunpack.c.l.b16 %v194
    %v464 = vunpack.c.h.b16 %v194
    %v465 = vunpack.c.l.b16 %v195
    %v466 = vunpack.c.h.b16 %v195
    %v467 = vunpack.c.l.b16 %v196
    %v468 = vunpack.c.h.b16 %v196
    %v469 = vunpack.c.l.b16 %v197
    %v470 = vunpack.c.h.b16 %v197
    %v471 = vunpack.c.l.b16 %v198
    %v472 = vunpack.c.h.b16 %v198
    %v473 = vunpack.c.l.b16 %v199
    %v474 = vunpack.c.h.b16 %v199
    %v475 = vunpack.c.l.b16 %v200
    %v476 = vunpack.c.h.b16 %v200
    %v477 = vunpack.c.l.b16 %v201
    %v478 = vunpack.c.h.b16 %v201
    %v479 = vunpack.c.l.b16 %v202
    %v480 = vunpack.c.h.b16 %v202
    %v481 = vunpack.c.l.b16 %v203
    %v482 = vunpack.c.h.b16 %v203
    %v483 = vunpack.c.l.b16 %v204
    %v484 = vunpack.c.h.b16 %v204
    %v485 = vunpack.c.l.b16 %v205
    %v486 = vunpack.c.h.b16 %v205
    %v487 = vunpack.c.l.b16 %v206
    %v488 = vunpack.c.h.b16 %v206
    %v489 = vunpack.c.l.b16 %v207
    %v490 = vunpack.c.h.b16 %v207
    %v491 = vunpack.c.l.b16 %v208
    %v492 = vunpack.c.h.b16 %v208
    %v493 = vunpack.c.l.b16 %v209
    %v494 = vunpack.c.h.b16 %v209
    %v495 = vunpack.c.l.b16 %v210
    %v496 = vunpack.c.h.b16 %v210
    %v497 = vunpack.c.l.b16 %v211
    %v498 = vunpack.c.h.b16 %v211
    %v499 = vunpack.c.l.b16 %v212
    %v500 = vunpack.c.h.b16 %v212
    %v501 = vunpack.c.l.b16 %v213
    %v502 = vunpack.c.h.b16 %v213
    %v503 = vunpack.c.l.b16 %v214
    %v504 = vunpack.c.h.b16 %v214
    %v505 = vunpack.c.l.b16 %v215
    %v506 = vunpack.c.h.b16 %v215
    %v507 = vunpack.c.l.b16 %v216
    %v508 = vunpack.c.h.b16 %v216
    %v509 = vunpack.c.l.b16 %v217
    %v510 = vunpack.c.h.b16 %v217
    %v511 = vunpack.c.l.b16 %v218
    %v512 = vunpack.c.h.b16 %v218
    %v513 = vunpack.c.l.b16 %v219
    %v514 = vunpack.c.h.b16 %v219
    %v515 = vunpack.c.l.b16 %v220
    %v516 = vunpack.c.h.b16 %v220
    %v517 = vunpack.c.l.b16 %v221
    %v518 = vunpack.c.h.b16 %v221
    %v519 = vunpack.c.l.b16 %v222
    %v520 = vunpack.c.h.b16 %v222
    %v521 = vunpack.c.l.b16 %v223
    %v522 = vunpack.c.h.b16 %v223
    %v523 = vunpack.c.l.b16 %v224
    %v524 = vunpack.c.h.b16 %v224
    %v525 = vunpack.c.l.b16 %v225
    %v526 = vunpack.c.h.b16 %v225
    %v527 = vunpack.c.l.b16 %v226
    %v528 = vunpack.c.h.b16 %v226
    %v529 = vunpack.c.l.b16 %v227
    %v530 = vunpack.c.h.b16 %v227
    %v531 = vunpack.c.l.b16 %v228
    %v532 = vunpack.c.h.b16 %v228
    %v533 = vunpack.c.l.b16 %v229
    %v534 = vunpack.c.h.b16 %v229
    %v535 = vunpack.c.l.b16 %v230
    %v536 = vunpack.c.h.b16 %v230
    %v537 = vunpack.c.l.b16 %v231
    %v538 = vunpack.c.h.b16 %v231
    %v539 = vunpack.c.l.b16 %v232
    %v540 = vunpack.c.h.b16 %v232
    %v541 = vunpack.c.l.b16 %v233
    %v542 = vunpack.c.h.b16 %v233
    %v543 = vunpack.c.l.b16 %v234
    %v544 = vunpack.c.h.b16 %v234
    %v545 = vunpack.c.l.b16 %v235
    %v546 = vunpack.c.h.b16 %v235
    %v547 = vunpack.c.l.b16 %v236
    %v548 = vunpack.c.h.b16 %v236
    %v549 = vunpack.c.l.b16 %v237
    %v550 = vunpack.c.h.b16 %v237
    %v551 = vunpack.c.l.b16 %v238
    %v552 = vunpack.c.h.b16 %v238
    %v553 = vunpack.c.l.b16 %v239
    %v554 = vunpack.c.h.b16 %v239
    %v555 = vunpack.c.l.b16 %v240
    %v556 = vunpack.c.h.b16 %v240
    %v557 = vunpack.c.l.b16 %v241
    %v558 = vunpack.c.h.b16 %v241
    %v559 = vunpack.c.l.b16 %v242
    %v560 = vunpack.c.h.b16 %v242
    %v561 = vunpack.c.l.b16 %v243
    %v562 = vunpack.c.h.b16 %v243
    %v563 = vunpack.c.l.b16 %v244
    %v564 = vunpack.c.h.b16 %v244
    %v565 = vunpack.c.l.b16 %v245
    %v566 = vunpack.c.h.b16 %v245
    %v567 = vunpack.c.l.b16 %v246
    %v568 = vunpack.c.h.b16 %v246
    %v569 = vunpack.c.l.b16 %v247
    %v570 = vunpack.c.h.b16 %v247
    %v571 = vunpack.c.l.b16 %v248
    %v572 = vunpack.c.h.b16 %v248
    %v573 = vunpack.c.l.b16 %v249
    %v574 = vunpack.c.h.b16 %v249
    %v575 = vunpack.c.l.b16 %v250
    %v576 = vunpack.c.h.b16 %v250
    %v577 = vunpack.c.l.b16 %v251
    %v578 = vunpack.c.h.b16 %v251
    %v579 = vunpack.c.l.b16 %v252
    %v580 = vunpack.c.h.b16 %v252
    %v581 = vunpack.c.l.b16 %v253
    %v582 = vunpack.c.h.b16 %v253
    %v583 = vunpack.c.l.b16 %v254
    %v584 = vunpack.c.h.b16 %v254
    %v585 = vunpack.c.l.b16 %v255
    %v586 = vunpack.c.h.b16 %v255
    %v587 = vunpack.c.l.b16 %v256
    %v588 = vunpack.c.h.b16 %v256
    %v589 = vunpack.c.l.b16 %v257
    %v590 = vunpack.c.h.b16 %v257
    %v591 = vunpack.c.l.b16 %v258
    %v592 = vunpack.c.h.b16 %v258
    %v593 = vunpack.c.l.b16 %v259
    %v594 = vunpack.c.h.b16 %v259
    %v595 = vunpack.c.l.b16 %v260
    %v596 = vunpack.c.h.b16 %v260
    %v597 = vunpack.c.l.b16 %v261
    %v598 = vunpack.c.h.b16 %v261
    %v599 = vunpack.c.l.b16 %v262
    %v600 = vunpack.c.h.b16 %v262
    %v601 = vunpack.c.l.b16 %v263
    %v602 = vunpack.c.h.b16 %v263
    %v603 = vunpack.c.l.b16 %v264
    %v604 = vunpack.c.h.b16 %v264
    %v605 = vunpack.c.l.b16 %v265
    %v606 = vunpack.c.h.b16 %v265
    %v607 = vunpack.c.l.b16 %v266
    %v608 = vunpack.c.h.b16 %v266
    %v609 = vunpack.c.l.b16 %v267
    %v610 = vunpack.c.h.b16 %v267
    %v611 = vunpack.c.l.b16 %v268
    %v612 = vunpack.c.h.b16 %v268
    %v613 = vunpack.c.l.b16 %v269
    %v614 = vunpack.c.h.b16 %v269
    %v615 = vunpack.c.l.b16 %v270
    %v616 = vunpack.c.h.b16 %v270
    %v617 = vunpack.c.l.b16 %v271
    %v618 = vunpack.c.h.b16 %v271
    %v619 = vunpack.c.l.b16 %v272
    %v620 = vunpack.c.h.b16 %v272
    %v621 = vunpack.c.l.b16 %v273
    %v622 = vunpack.c.h.b16 %v273
    %v623 = vunpack.c.l.b16 %v274
    %v624 = vunpack.c.h.b16 %v274
    %v625 = vunpack.c.l.b16 %v275
    %v626 = vunpack.c.h.b16 %v275
    %v627 = vunpack.c.l.b16 %v276
    %v628 = vunpack.c.h.b16 %v276
    %v629 = vunpack.c.l.b16 %v277
    %v630 = vunpack.c.h.b16 %v277
    %v631 = vunpack.c.l.b16 %v278
    %v632 = vunpack.c.h.b16 %v278
    %v633 = vunpack.c.l.b16 %v279
    %v634 = vunpack.c.h.b16 %v279
    %v635 = vunpack.c.l.b16 %v280
    %v636 = vunpack.c.h.b16 %v280
    %v637 = vunpack.c.l.b16 %v281
    %v638 = vunpack.c.h.b16 %v281
    %v639 = vunpack.c.l.b16 %v282
    %v640 = vunpack.c.h.b16 %v282
    %v641 = vunpack.c.l.b16 %v283
    %v642 = vunpack.c.h.b16 %v283
    %v643 = vunpack.c.l.b16 %v284
    %v644 = vunpack.c.h.b16 %v284
    %v645 = vunpack.c.l.b16 %v285
    %v646 = vunpack.c.h.b16 %v285
    %v647 = vunpack.c.l.b16 %v286
    %v648 = vunpack.c.h.b16 %v286
    %v649 = vunpack.c.l.b16 %v287
    %v650 = vunpack.c.h.b16 %v287
    %v651 = vunpack.c.l.b16 %v288
    %v652 = vunpack.c.h.b16 %v288
    %v653 = vunpack.c.l.b16 %v289
    %v654 = vunpack.c.h.b16 %v289
    %v655 = vunpack.c.l.b16 %v290
    %v656 = vunpack.c.h.b16 %v290
    %v657 = vunpack.c.l.b16 %v291
    %v658 = vunpack.c.h.b16 %v291
    %v659 = vunpack.c.l.b16 %v292
    %v660 = vunpack.c.h.b16 %v292
    %v661 = vunpack.c.l.b16 %v293
    %v662 = vunpack.c.h.b16 %v293
    %v663 = vunpack.c.l.b16 %v294
    %v664 = vunpack.c.h.b16 %v294
    %v665 = vunpack.c.l.b16 %v295
    %v666 = vunpack.c.h.b16 %v295
    %v667 = vunpack.c.l.b16 %v296
    %v668 = vunpack.c.h.b16 %v296
    %v669 = vunpack.c.l.b16 %v297
    %v670 = vunpack.c.h.b16 %v297
    %v671 = vunpack.c.l.b16 %v298
    %v672 = vunpack.c.h.b16 %v298
    %v673 = vunpack.c.l.b16 %v299
    %v674 = vunpack.c.h.b16 %v299
    %v675 = vunpack.c.l.b16 %v300
    %v676 = vunpack.c.h.b16 %v300
    %v677 = vunpack.c.l.b16 %v301
    %v678 = vunpack.c.h.b16 %v301
    %v679 = vunpack.c.l.b16 %v302
    %v680 = vunpack.c.h.b16 %v302
    %v681 = vunpack.c.l.b16 %v303
    %v682 = vunpack.c.h.b16 %v303
    %v683 = vunpack.c.l.b16 %v304
    %v684 = vunpack.c.h.b16 %v304
    %v685 = vunpack.c.l.b16 %v305
    %v686 = vunpack.c.h.b16 %v305
    %v687 = vunpack.c.l.b16 %v306
    %v688 = vunpack.c.h.b16 %v306
    %v689 = vunpack.c.l.b16 %v307
    %v690 = vunpack.c.h.b16 %v307
    %v691 = vunpack.c.l.b16 %v308
    %v692 = vunpack.c.h.b16 %v308
    %v693 = vpack.c.b16 %v441, %v437
    %v694 = vpack.c.b16 %v442, %v438
    %v695 = vpack.c.b16 %v443, %v439
    %v696 = vpack.c.b16 %v444, %v440
    %v697 = vpack.c.b16 %v449, %v445
    %v698 = vpack.c.b16 %v450, %v446
    %v699 = vpack.c.b16 %v451, %v447
    %v700 = vpack.c.b16 %v452, %v448
    %v701 = vpack.c.b16 %v457, %v453
    %v702 = vpack.c.b16 %v458, %v454
    %v703 = vpack.c.b16 %v459, %v455
    %v704 = vpack.c.b16 %v460, %v456
    %v705 = vpack.c.b16 %v465, %v461
    %v706 = vpack.c.b16 %v466, %v462
    %v707 = vpack.c.b16 %v467, %v463
    %v708 = vpack.c.b16 %v468, %v464
    %v709 = vpack.c.b16 %v473, %v469
    %v710 = vpack.c.b16 %v474, %v470
    %v711 = vpack.c.b16 %v475, %v471
    %v712 = vpack.c.b16 %v476, %v472
    %v713 = vpack.c.b16 %v481, %v477
    %v714 = vpack.c.b16 %v482, %v478
    %v715 = vpack.c.b16 %v483, %v479
    %v716 = vpack.c.b16 %v484, %v480
    %v717 = vpack.c.b16 %v489, %v485
    %v718 = vpack.c.b16 %v490, %v486
    %v719 = vpack.c.b16 %v491, %v487
    %v720 = vpack.c.b16 %v492, %v488
    %v721 = vpack.c.b16 %v497, %v493
    %v722 = vpack.c.b16 %v498, %v494
    %v723 = vpack.c.b16 %v499, %v495
    %v724 = vpack.c.b16 %v500, %v496
    %v725 = vpack.c.b16 %v505, %v501
    %v726 = vpack.c.b16 %v506, %v502
    %v727 = vpack.c.b16 %v507, %v503
    %v728 = vpack.c.b16 %v508, %v504
    %v729 = vpack.c.b16 %v513, %v509
    %v730 = vpack.c.b16 %v514, %v510
    %v731 = vpack.c.b16 %v515, %v511
    %v732 = vpack.c.b16 %v516, %v512
    %v733 = vpack.c.b16 %v521, %v517
    %v734 = vpack.c.b16 %v522, %v518
    %v735 = vpack.c.b16 %v523, %v519
    %v736 = vpack.c.b16 %v524, %v520
    %v737 = vpack.c.b16 %v529, %v525
    %v738 = vpack.c.b16 %v530, %v526
    %v739 = vpack.c.b16 %v531, %v527
    %v740 = vpack.c.b16 %v532, %v528
    %v741 = vpack.c.b16 %v537, %v533
    %v742 = vpack.c.b16 %v538, %v534
    %v743 = vpack.c.b16 %v539, %v535
    %v744 = vpack.c.b16 %v540, %v536
    %v745 = vpack.c.b16 %v545, %v541
    %v746 = vpack.c.b16 %v546, %v542
    %v747 = vpack.c.b16 %v547, %v543
    %v748 = vpack.c.b16 %v548, %v544
    %v749 = vpack.c.b16 %v553, %v549
    %v750 = vpack.c.b16 %v554, %v550
    %v751 = vpack.c.b16 %v555, %v551
    %v752 = vpack.c.b16 %v556, %v552
    %v753 = vpack.c.b16 %v561, %v557
    %v754 = vpack.c.b16 %v562, %v558
    %v755 = vpack.c.b16 %v563, %v559
    %v756 = vpack.c.b16 %v564, %v560
    %v757 = vpack.c.b16 %v569, %v565
    %v758 = vpack.c.b16 %v570, %v566
    %v759 = vpack.c.b16 %v571, %v567
    %v760 = vpack.c.b16 %v572, %v568
    %v761 = vpack.c.b16 %v577, %v573
    %v762 = vpack.c.b16 %v578, %v574
    %v763 = vpack.c.b16 %v579, %v575
    %v764 = vpack.c.b16 %v580, %v576
    %v765 = vpack.c.b16 %v585, %v581
    %v766 = vpack.c.b16 %v586, %v582
    %v767 = vpack.c.b16 %v587, %v583
    %v768 = vpack.c.b16 %v588, %v584
    %v769 = vpack.c.b16 %v593, %v589
    %v770 = vpack.c.b16 %v594, %v590
    %v771 = vpack.c.b16 %v595, %v591
    %v772 = vpack.c.b16 %v596, %v592
    %v773 = vpack.c.b16 %v601, %v597
    %v774 = vpack.c.b16 %v602, %v598
    %v775 = vpack.c.b16 %v603, %v599
    %v776 = vpack.c.b16 %v604, %v600
    %v777 = vpack.c.b16 %v609, %v605
    %v778 = vpack.c.b16 %v610, %v606
    %v779 = vpack.c.b16 %v611, %v607
    %v780 = vpack.c.b16 %v612, %v608
    %v781 = vpack.c.b16 %v617, %v613
    %v782 = vpack.c.b16 %v618, %v614
    %v783 = vpack.c.b16 %v619, %v615
    %v784 = vpack.c.b16 %v620, %v616
    %v785 = vpack.c.b16 %v625, %v621
    %v786 = vpack.c.b16 %v626, %v622
    %v787 = vpack.c.b16 %v627, %v623
    %v788 = vpack.c.b16 %v628, %v624
    %v789 = vpack.c.b16 %v633, %v629
    %v790 = vpack.c.b16 %v634, %v630
    %v791 = vpack.c.b16 %v635, %v631
    %v792 = vpack.c.b16 %v636, %v632
    %v793 = vpack.c.b16 %v641, %v637
    %v794 = vpack.c.b16 %v642, %v638
    %v795 = vpack.c.b16 %v643, %v639
    %v796 = vpack.c.b16 %v644, %v640
    %v797 = vpack.c.b16 %v649, %v645
    %v798 = vpack.c.b16 %v650, %v646
    %v799 = vpack.c.b16 %v651, %v647
    %v800 = vpack.c.b16 %v652, %v648
    %v801 = vpack.c.b16 %v657, %v653
    %v802 = vpack.c.b16 %v658, %v654
    %v803 = vpack.c.b16 %v659, %v655
    %v804 = vpack.c.b16 %v660, %v656
    %v805 = vpack.c.b16 %v665, %v661
    %v806 = vpack.c.b16 %v666, %v662
    %v807 = vpack.c.b16 %v667, %v663
    %v808 = vpack.c.b16 %v668, %v664
    %v809 = vpack.c.b16 %v673, %v669
    %v810 = vpack.c.b16 %v674, %v670
    %v811 = vpack.c.b16 %v675, %v671
    %v812 = vpack.c.b16 %v676, %v672
    %v813 = vpack.c.b16 %v681, %v677
    %v814 = vpack.c.b16 %v682, %v678
    %v815 = vpack.c.b16 %v683, %v679
    %v816 = vpack.c.b16 %v684, %v680
    %v817 = vpack.c.b16 %v689, %v685
    %v818 = vpack.c.b16 %v690, %v686
    %v819 = vpack.c.b16 %v691, %v687
    %v820 = vpack.c.b16 %v692, %v688
    %949 = vmatpush.bf16.msra.mxu0 %v721
    %950 = vmatpush.bf16.msra.mxu0 %v717
    %951 = vmatpush.bf16.msra.mxu0 %v713
    %952 = vmatpush.bf16.msra.mxu0 %v709
    %953 = vmatpush.bf16.msra.mxu0 %v705
    %954 = vmatpush.bf16.msra.mxu0 %v701
    %955 = vmatpush.bf16.msra.mxu0 %v697
    %956 = vmatpush.bf16.msra.mxu0 %v693
    %957 = vmatmul.bf16.gmra.mxu0 %v177
    %v958 = vpop.f32.mrf.mxu0
    %v959 = vadd.f32 0.0, %v958
    %v960 = vpop.f32.mrf.mxu0
    %961 = vdwg.mxu0
    %962 = vmatpush.bf16.msra.mxu0 %v753
    %963 = vmatpush.bf16.msra.mxu0 %v749
    %964 = vmatpush.bf16.msra.mxu0 %v745
    %965 = vmatpush.bf16.msra.mxu0 %v741
    %966 = vmatpush.bf16.msra.mxu0 %v737
    %967 = vmatpush.bf16.msra.mxu0 %v733
    %968 = vmatpush.bf16.msra.mxu0 %v729
    %969 = vmatpush.bf16.msra.mxu0 %v725
    %970 = vmatmul.bf16.gmra.mxu0 %v178
    %v971 = vpop.f32.mrf.mxu0
    %v972 = vadd.f32 %v959, %v971
    %v973 = vpop.f32.mrf.mxu0
    %974 = vdwg.mxu0
    %975 = vmatpush.bf16.msra.mxu0 %v785
    %976 = vmatpush.bf16.msra.mxu0 %v781
    %977 = vmatpush.bf16.msra.mxu0 %v777
    %978 = vmatpush.bf16.msra.mxu0 %v773
    %979 = vmatpush.bf16.msra.mxu0 %v769
    %980 = vmatpush.bf16.msra.mxu0 %v765
    %981 = vmatpush.bf16.msra.mxu0 %v761
    %982 = vmatpush.bf16.msra.mxu0 %v757
    %983 = vmatmul.bf16.gmra.mxu0 %v179
    %v984 = vpop.f32.mrf.mxu0
    %v985 = vadd.f32 %v972, %v984
    %v986 = vpop.f32.mrf.mxu0
    %987 = vdwg.mxu0
    %988 = vmatpush.bf16.msra.mxu0 %v817
    %989 = vmatpush.bf16.msra.mxu0 %v813
    %990 = vmatpush.bf16.msra.mxu0 %v809
    %991 = vmatpush.bf16.msra.mxu0 %v805
    %992 = vmatpush.bf16.msra.mxu0 %v801
    %993 = vmatpush.bf16.msra.mxu0 %v797
    %994 = vmatpush.bf16.msra.mxu0 %v793
    %995 = vmatpush.bf16.msra.mxu0 %v789
    %996 = vmatmul.bf16.gmra.mxu0 %v180
    %v997 = vpop.f32.mrf.mxu0
    %v998 = vadd.f32 %v985, %v997
    %v999 = vpop.f32.mrf.mxu0
    %1000 = vdwg.mxu0
    %1001 = vmatpush.bf16.msra.mxu0 %v722
    %1002 = vmatpush.bf16.msra.mxu0 %v718
    %1003 = vmatpush.bf16.msra.mxu0 %v714
    %1004 = vmatpush.bf16.msra.mxu0 %v710
    %1005 = vmatpush.bf16.msra.mxu0 %v706
    %1006 = vmatpush.bf16.msra.mxu0 %v702
    %1007 = vmatpush.bf16.msra.mxu0 %v698
    %1008 = vmatpush.bf16.msra.mxu0 %v694
    %1009 = vmatmul.bf16.gmra.mxu0 %v177
    %v1010 = vpop.f32.mrf.mxu0
    %v1011 = vadd.f32 0.0, %v1010
    %v1012 = vpop.f32.mrf.mxu0
    %1013 = vdwg.mxu0
    %1014 = vmatpush.bf16.msra.mxu0 %v754
    %1015 = vmatpush.bf16.msra.mxu0 %v750
    %1016 = vmatpush.bf16.msra.mxu0 %v746
    %1017 = vmatpush.bf16.msra.mxu0 %v742
    %1018 = vmatpush.bf16.msra.mxu0 %v738
    %1019 = vmatpush.bf16.msra.mxu0 %v734
    %1020 = vmatpush.bf16.msra.mxu0 %v730
    %1021 = vmatpush.bf16.msra.mxu0 %v726
    %1022 = vmatmul.bf16.gmra.mxu0 %v178
    %v1023 = vpop.f32.mrf.mxu0
    %v1024 = vadd.f32 %v1011, %v1023
    %v1025 = vpop.f32.mrf.mxu0
    %1026 = vdwg.mxu0
    %1027 = vmatpush.bf16.msra.mxu0 %v786
    %1028 = vmatpush.bf16.msra.mxu0 %v782
    %1029 = vmatpush.bf16.msra.mxu0 %v778
    %1030 = vmatpush.bf16.msra.mxu0 %v774
    %1031 = vmatpush.bf16.msra.mxu0 %v770
    %1032 = vmatpush.bf16.msra.mxu0 %v766
    %1033 = vmatpush.bf16.msra.mxu0 %v762
    %1034 = vmatpush.bf16.msra.mxu0 %v758
    %1035 = vmatmul.bf16.gmra.mxu0 %v179
    %v1036 = vpop.f32.mrf.mxu0
    %v1037 = vadd.f32 %v1024, %v1036
    %v1038 = vpop.f32.mrf.mxu0
    %1039 = vdwg.mxu0
    %1040 = vmatpush.bf16.msra.mxu0 %v818
    %1041 = vmatpush.bf16.msra.mxu0 %v814
    %1042 = vmatpush.bf16.msra.mxu0 %v810
    %1043 = vmatpush.bf16.msra.mxu0 %v806
    %1044 = vmatpush.bf16.msra.mxu0 %v802
    %1045 = vmatpush.bf16.msra.mxu0 %v798
    %1046 = vmatpush.bf16.msra.mxu0 %v794
    %1047 = vmatpush.bf16.msra.mxu0 %v790
    %1048 = vmatmul.bf16.gmra.mxu0 %v180
    %v1049 = vpop.f32.mrf.mxu0
    %v1050 = vadd.f32 %v1037, %v1049
    %v1051 = vpop.f32.mrf.mxu0
    %1052 = vdwg.mxu0
    %1053 = vmatpush.bf16.msra.mxu0 %v723
    %1054 = vmatpush.bf16.msra.mxu0 %v719
    %1055 = vmatpush.bf16.msra.mxu0 %v715
    %1056 = vmatpush.bf16.msra.mxu0 %v711
    %1057 = vmatpush.bf16.msra.mxu0 %v707
    %1058 = vmatpush.bf16.msra.mxu0 %v703
    %1059 = vmatpush.bf16.msra.mxu0 %v699
    %1060 = vmatpush.bf16.msra.mxu0 %v695
    %1061 = vmatmul.bf16.gmra.mxu0 %v177
    %v1062 = vpop.f32.mrf.mxu0
    %v1063 = vadd.f32 0.0, %v1062
    %v1064 = vpop.f32.mrf.mxu0
    %1065 = vdwg.mxu0
    %1066 = vmatpush.bf16.msra.mxu0 %v755
    %1067 = vmatpush.bf16.msra.mxu0 %v751
    %1068 = vmatpush.bf16.msra.mxu0 %v747
    %1069 = vmatpush.bf16.msra.mxu0 %v743
    %1070 = vmatpush.bf16.msra.mxu0 %v739
    %1071 = vmatpush.bf16.msra.mxu0 %v735
    %1072 = vmatpush.bf16.msra.mxu0 %v731
    %1073 = vmatpush.bf16.msra.mxu0 %v727
    %1074 = vmatmul.bf16.gmra.mxu0 %v178
    %v1075 = vpop.f32.mrf.mxu0
    %v1076 = vadd.f32 %v1063, %v1075
    %v1077 = vpop.f32.mrf.mxu0
    %1078 = vdwg.mxu0
    %1079 = vmatpush.bf16.msra.mxu0 %v787
    %1080 = vmatpush.bf16.msra.mxu0 %v783
    %1081 = vmatpush.bf16.msra.mxu0 %v779
    %1082 = vmatpush.bf16.msra.mxu0 %v775
    %1083 = vmatpush.bf16.msra.mxu0 %v771
    %1084 = vmatpush.bf16.msra.mxu0 %v767
    %1085 = vmatpush.bf16.msra.mxu0 %v763
    %1086 = vmatpush.bf16.msra.mxu0 %v759
    %1087 = vmatmul.bf16.gmra.mxu0 %v179
    %v1088 = vpop.f32.mrf.mxu0
    %v1089 = vadd.f32 %v1076, %v1088
    %v1090 = vpop.f32.mrf.mxu0
    %1091 = vdwg.mxu0
    %1092 = vmatpush.bf16.msra.mxu0 %v819
    %1093 = vmatpush.bf16.msra.mxu0 %v815
    %1094 = vmatpush.bf16.msra.mxu0 %v811
    %1095 = vmatpush.bf16.msra.mxu0 %v807
    %1096 = vmatpush.bf16.msra.mxu0 %v803
    %1097 = vmatpush.bf16.msra.mxu0 %v799
    %1098 = vmatpush.bf16.msra.mxu0 %v795
    %1099 = vmatpush.bf16.msra.mxu0 %v791
    %1100 = vmatmul.bf16.gmra.mxu0 %v180
    %v1101 = vpop.f32.mrf.mxu0
    %v1102 = vadd.f32 %v1089, %v1101
    %v1103 = vpop.f32.mrf.mxu0
    %1104 = vdwg.mxu0
    %1105 = vmatpush.bf16.msra.mxu0 %v724
    %1106 = vmatpush.bf16.msra.mxu0 %v720
    %1107 = vmatpush.bf16.msra.mxu0 %v716
    %1108 = vmatpush.bf16.msra.mxu0 %v712
    %1109 = vmatpush.bf16.msra.mxu0 %v708
    %1110 = vmatpush.bf16.msra.mxu0 %v704
    %1111 = vmatpush.bf16.msra.mxu0 %v700
    %1112 = vmatpush.bf16.msra.mxu0 %v696
    %1113 = vmatmul.bf16.gmra.mxu0 %v177
    %v1114 = vpop.f32.mrf.mxu0
    %v1115 = vadd.f32 0.0, %v1114
    %v1116 = vpop.f32.mrf.mxu0
    %1117 = vdwg.mxu0
    %1118 = vmatpush.bf16.msra.mxu0 %v756
    %1119 = vmatpush.bf16.msra.mxu0 %v752
    %1120 = vmatpush.bf16.msra.mxu0 %v748
    %1121 = vmatpush.bf16.msra.mxu0 %v744
    %1122 = vmatpush.bf16.msra.mxu0 %v740
    %1123 = vmatpush.bf16.msra.mxu0 %v736
    %1124 = vmatpush.bf16.msra.mxu0 %v732
    %1125 = vmatpush.bf16.msra.mxu0 %v728
    %1126 = vmatmul.bf16.gmra.mxu0 %v178
    %v1127 = vpop.f32.mrf.mxu0
    %v1128 = vadd.f32 %v1115, %v1127
    %v1129 = vpop.f32.mrf.mxu0
    %1130 = vdwg.mxu0
    %1131 = vmatpush.bf16.msra.mxu0 %v788
    %1132 = vmatpush.bf16.msra.mxu0 %v784
    %1133 = vmatpush.bf16.msra.mxu0 %v780
    %1134 = vmatpush.bf16.msra.mxu0 %v776
    %1135 = vmatpush.bf16.msra.mxu0 %v772
    %1136 = vmatpush.bf16.msra.mxu0 %v768
    %1137 = vmatpush.bf16.msra.mxu0 %v764
    %1138 = vmatpush.bf16.msra.mxu0 %v760
    %1139 = vmatmul.bf16.gmra.mxu0 %v179
    %v1140 = vpop.f32.mrf.mxu0
    %v1141 = vadd.f32 %v1128, %v1140
    %v1142 = vpop.f32.mrf.mxu0
    %1143 = vdwg.mxu0
    %1144 = vmatpush.bf16.msra.mxu0 %v820
    %1145 = vmatpush.bf16.msra.mxu0 %v816
    %1146 = vmatpush.bf16.msra.mxu0 %v812
    %1147 = vmatpush.bf16.msra.mxu0 %v808
    %1148 = vmatpush.bf16.msra.mxu0 %v804
    %1149 = vmatpush.bf16.msra.mxu0 %v800
    %1150 = vmatpush.bf16.msra.mxu0 %v796
    %1151 = vmatpush.bf16.msra.mxu0 %v792
    %1152 = vmatmul.bf16.gmra.mxu0 %v180
    %v1153 = vpop.f32.mrf.mxu0
    %v1154 = vadd.f32 %v1141, %v1153
    %v1155 = vpop.f32.mrf.mxu0
    %1156 = vdwg.mxu0
    %v1157 = vmax.f32 %v998, 0.0
    %v1158 = vmax.f32 %v1050, 0.0
    %v1159 = vmax.f32 %v1102, 0.0
    %v1160 = vmax.f32 %v1154, 0.0
    %v1161 = vpack.c.bf16 %v1157, %v1157
    %v1162 = vpack.c.bf16 %v1158, %v1158
    %v1163 = vpack.c.bf16 %v1159, %v1159
    %v1164 = vpack.c.bf16 %v1160, %v1160
    %v1165 = vld [vmem:[%s4] sm:$0xf]
    %v1166 = vld [vmem:[%s4 + $0x4] sm:$0xf]
    %v1167 = vld [vmem:[%s4 + $0x8] sm:$0xf]
    %v1168 = vld [vmem:[%s4 + $0xc] sm:$0xf]
    %v1169 = vld [vmem:[%s4 + $0x10] sm:$0xf]
    %v1170 = vld [vmem:[%s4 + $0x14] sm:$0xf]
    %v1171 = vld [vmem:[%s4 + $0x18] sm:$0xf]
    %v1172 = vld [vmem:[%s4 + $0x1c] sm:$0xf]
    %v1173 = vld [vmem:[%s4 + $0x20] sm:$0xf]
    %v1174 = vld [vmem:[%s4 + $0x24] sm:$0xf]
    %v1175 = vld [vmem:[%s4 + $0x28] sm:$0xf]
    %v1176 = vld [vmem:[%s4 + $0x2c] sm:$0xf]
    %v1177 = vld [vmem:[%s4 + $0x30] sm:$0xf]
    %v1178 = vld [vmem:[%s4 + $0x34] sm:$0xf]
    %v1179 = vld [vmem:[%s4 + $0x38] sm:$0xf]
    %v1180 = vld [vmem:[%s4 + $0x3c] sm:$0xf]
    %v1181 = vld [vmem:[%s4 + $0x40] sm:$0xf]
    %v1182 = vld [vmem:[%s4 + $0x44] sm:$0xf]
    %v1183 = vld [vmem:[%s4 + $0x48] sm:$0xf]
    %v1184 = vld [vmem:[%s4 + $0x4c] sm:$0xf]
    %v1185 = vld [vmem:[%s4 + $0x50] sm:$0xf]
    %v1186 = vld [vmem:[%s4 + $0x54] sm:$0xf]
    %v1187 = vld [vmem:[%s4 + $0x58] sm:$0xf]
    %v1188 = vld [vmem:[%s4 + $0x5c] sm:$0xf]
    %v1189 = vld [vmem:[%s4 + $0x60] sm:$0xf]
    %v1190 = vld [vmem:[%s4 + $0x64] sm:$0xf]
    %v1191 = vld [vmem:[%s4 + $0x68] sm:$0xf]
    %v1192 = vld [vmem:[%s4 + $0x6c] sm:$0xf]
    %v1193 = vld [vmem:[%s4 + $0x70] sm:$0xf]
    %v1194 = vld [vmem:[%s4 + $0x74] sm:$0xf]
    %v1195 = vld [vmem:[%s4 + $0x78] sm:$0xf]
    %v1196 = vld [vmem:[%s4 + $0x7c] sm:$0xf]
    %v1197 = vld [vmem:[%s4 + $0x80] sm:$0xf]
    %v1198 = vld [vmem:[%s4 + $0x84] sm:$0xf]
    %v1199 = vld [vmem:[%s4 + $0x88] sm:$0xf]
    %v1200 = vld [vmem:[%s4 + $0x8c] sm:$0xf]
    %v1201 = vld [vmem:[%s4 + $0x90] sm:$0xf]
    %v1202 = vld [vmem:[%s4 + $0x94] sm:$0xf]
    %v1203 = vld [vmem:[%s4 + $0x98] sm:$0xf]
    %v1204 = vld [vmem:[%s4 + $0x9c] sm:$0xf]
    %v1205 = vld [vmem:[%s4 + $0xa0] sm:$0xf]
    %v1206 = vld [vmem:[%s4 + $0xa4] sm:$0xf]
    %v1207 = vld [vmem:[%s4 + $0xa8] sm:$0xf]
    %v1208 = vld [vmem:[%s4 + $0xac] sm:$0xf]
    %v1209 = vld [vmem:[%s4 + $0xb0] sm:$0xf]
    %v1210 = vld [vmem:[%s4 + $0xb4] sm:$0xf]
    %v1211 = vld [vmem:[%s4 + $0xb8] sm:$0xf]
    %v1212 = vld [vmem:[%s4 + $0xbc] sm:$0xf]
    %v1213 = vld [vmem:[%s4 + $0xc0] sm:$0xf]
    %v1214 = vld [vmem:[%s4 + $0xc4] sm:$0xf]
    %v1215 = vld [vmem:[%s4 + $0xc8] sm:$0xf]
    %v1216 = vld [vmem:[%s4 + $0xcc] sm:$0xf]
    %v1217 = vld [vmem:[%s4 + $0xd0] sm:$0xf]
    %v1218 = vld [vmem:[%s4 + $0xd4] sm:$0xf]
    %v1219 = vld [vmem:[%s4 + $0xd8] sm:$0xf]
    %v1220 = vld [vmem:[%s4 + $0xdc] sm:$0xf]
    %v1221 = vld [vmem:[%s4 + $0xe0] sm:$0xf]
    %v1222 = vld [vmem:[%s4 + $0xe4] sm:$0xf]
    %v1223 = vld [vmem:[%s4 + $0xe8] sm:$0xf]
    %v1224 = vld [vmem:[%s4 + $0xec] sm:$0xf]
    %v1225 = vld [vmem:[%s4 + $0xf0] sm:$0xf]
    %v1226 = vld [vmem:[%s4 + $0xf4] sm:$0xf]
    %v1227 = vld [vmem:[%s4 + $0xf8] sm:$0xf]
    %v1228 = vld [vmem:[%s4 + $0xfc] sm:$0xf]
    %v1293 = vunpack.c.l.b16 %v1165
    %v1294 = vunpack.c.l.b16 %v1166
    %v1295 = vunpack.c.l.b16 %v1167
    %v1296 = vunpack.c.l.b16 %v1168
    %v1297 = vunpack.c.l.b16 %v1169
    %v1298 = vunpack.c.l.b16 %v1170
    %v1299 = vunpack.c.l.b16 %v1171
    %v1300 = vunpack.c.l.b16 %v1172
    %v1301 = vunpack.c.l.b16 %v1173
    %v1302 = vunpack.c.l.b16 %v1174
    %v1303 = vunpack.c.l.b16 %v1175
    %v1304 = vunpack.c.l.b16 %v1176
    %v1305 = vunpack.c.l.b16 %v1177
    %v1306 = vunpack.c.l.b16 %v1178
    %v1307 = vunpack.c.l.b16 %v1179
    %v1308 = vunpack.c.l.b16 %v1180
    %v1309 = vunpack.c.l.b16 %v1181
    %v1310 = vunpack.c.l.b16 %v1182
    %v1311 = vunpack.c.l.b16 %v1183
    %v1312 = vunpack.c.l.b16 %v1184
    %v1313 = vunpack.c.l.b16 %v1185
    %v1314 = vunpack.c.l.b16 %v1186
    %v1315 = vunpack.c.l.b16 %v1187
    %v1316 = vunpack.c.l.b16 %v1188
    %v1317 = vunpack.c.l.b16 %v1189
    %v1318 = vunpack.c.l.b16 %v1190
    %v1319 = vunpack.c.l.b16 %v1191
    %v1320 = vunpack.c.l.b16 %v1192
    %v1321 = vunpack.c.l.b16 %v1193
    %v1322 = vunpack.c.l.b16 %v1194
    %v1323 = vunpack.c.l.b16 %v1195
    %v1324 = vunpack.c.l.b16 %v1196
    %v1325 = vunpack.c.l.b16 %v1197
    %v1326 = vunpack.c.l.b16 %v1198
    %v1327 = vunpack.c.l.b16 %v1199
    %v1328 = vunpack.c.l.b16 %v1200
    %v1329 = vunpack.c.l.b16 %v1201
    %v1330 = vunpack.c.l.b16 %v1202
    %v1331 = vunpack.c.l.b16 %v1203
    %v1332 = vunpack.c.l.b16 %v1204
    %v1333 = vunpack.c.l.b16 %v1205
    %v1334 = vunpack.c.l.b16 %v1206
    %v1335 = vunpack.c.l.b16 %v1207
    %v1336 = vunpack.c.l.b16 %v1208
    %v1337 = vunpack.c.l.b16 %v1209
    %v1338 = vunpack.c.l.b16 %v1210
    %v1339 = vunpack.c.l.b16 %v1211
    %v1340 = vunpack.c.l.b16 %v1212
    %v1341 = vunpack.c.l.b16 %v1213
    %v1342 = vunpack.c.l.b16 %v1214
    %v1343 = vunpack.c.l.b16 %v1215
    %v1344 = vunpack.c.l.b16 %v1216
    %v1345 = vunpack.c.l.b16 %v1217
    %v1346 = vunpack.c.l.b16 %v1218
    %v1347 = vunpack.c.l.b16 %v1219
    %v1348 = vunpack.c.l.b16 %v1220
    %v1349 = vunpack.c.l.b16 %v1221
    %v1350 = vunpack.c.l.b16 %v1222
    %v1351 = vunpack.c.l.b16 %v1223
    %v1352 = vunpack.c.l.b16 %v1224
    %v1353 = vunpack.c.l.b16 %v1225
    %v1354 = vunpack.c.l.b16 %v1226
    %v1355 = vunpack.c.l.b16 %v1227
    %v1356 = vunpack.c.l.b16 %v1228
    %v1357 = vpack.c.b16 %v1294, %v1293
    %v1358 = vpack.c.b16 %v1296, %v1295
    %v1359 = vpack.c.b16 %v1298, %v1297
    %v1360 = vpack.c.b16 %v1300, %v1299
    %v1361 = vpack.c.b16 %v1302, %v1301
    %v1362 = vpack.c.b16 %v1304, %v1303
    %v1363 = vpack.c.b16 %v1306, %v1305
    %v1364 = vpack.c.b16 %v1308, %v1307
    %v1365 = vpack.c.b16 %v1310, %v1309
    %v1366 = vpack.c.b16 %v1312, %v1311
    %v1367 = vpack.c.b16 %v1314, %v1313
    %v1368 = vpack.c.b16 %v1316, %v1315
    %v1369 = vpack.c.b16 %v1318, %v1317
    %v1370 = vpack.c.b16 %v1320, %v1319
    %v1371 = vpack.c.b16 %v1322, %v1321
    %v1372 = vpack.c.b16 %v1324, %v1323
    %v1373 = vpack.c.b16 %v1326, %v1325
    %v1374 = vpack.c.b16 %v1328, %v1327
    %v1375 = vpack.c.b16 %v1330, %v1329
    %v1376 = vpack.c.b16 %v1332, %v1331
    %v1377 = vpack.c.b16 %v1334, %v1333
    %v1378 = vpack.c.b16 %v1336, %v1335
    %v1379 = vpack.c.b16 %v1338, %v1337
    %v1380 = vpack.c.b16 %v1340, %v1339
    %v1381 = vpack.c.b16 %v1342, %v1341
    %v1382 = vpack.c.b16 %v1344, %v1343
    %v1383 = vpack.c.b16 %v1346, %v1345
    %v1384 = vpack.c.b16 %v1348, %v1347
    %v1385 = vpack.c.b16 %v1350, %v1349
    %v1386 = vpack.c.b16 %v1352, %v1351
    %v1387 = vpack.c.b16 %v1354, %v1353
    %v1388 = vpack.c.b16 %v1356, %v1355
    %1421 = vmatpush.bf16.msra.mxu0 %v1364
    %1422 = vmatpush.bf16.msra.mxu0 %v1363
    %1423 = vmatpush.bf16.msra.mxu0 %v1362
    %1424 = vmatpush.bf16.msra.mxu0 %v1361
    %1425 = vmatpush.bf16.msra.mxu0 %v1360
    %1426 = vmatpush.bf16.msra.mxu0 %v1359
    %1427 = vmatpush.bf16.msra.mxu0 %v1358
    %1428 = vmatpush.bf16.msra.mxu0 %v1357
    %1429 = vmatmul.bf16.gmra.mxu0 %v1161
    %v1430 = vpop.f32.mrf.mxu0
    %v1431 = vadd.f32 0.0, %v1430
    %v1432 = vpop.f32.mrf.mxu0
    %1433 = vdwg.mxu0
    %1434 = vmatpush.bf16.msra.mxu0 %v1372
    %1435 = vmatpush.bf16.msra.mxu0 %v1371
    %1436 = vmatpush.bf16.msra.mxu0 %v1370
    %1437 = vmatpush.bf16.msra.mxu0 %v1369
    %1438 = vmatpush.bf16.msra.mxu0 %v1368
    %1439 = vmatpush.bf16.msra.mxu0 %v1367
    %1440 = vmatpush.bf16.msra.mxu0 %v1366
    %1441 = vmatpush.bf16.msra.mxu0 %v1365
    %1442 = vmatmul.bf16.gmra.mxu0 %v1162
    %v1443 = vpop.f32.mrf.mxu0
    %v1444 = vadd.f32 %v1431, %v1443
    %v1445 = vpop.f32.mrf.mxu0
    %1446 = vdwg.mxu0
    %1447 = vmatpush.bf16.msra.mxu0 %v1380
    %1448 = vmatpush.bf16.msra.mxu0 %v1379
    %1449 = vmatpush.bf16.msra.mxu0 %v1378
    %1450 = vmatpush.bf16.msra.mxu0 %v1377
    %1451 = vmatpush.bf16.msra.mxu0 %v1376
    %1452 = vmatpush.bf16.msra.mxu0 %v1375
    %1453 = vmatpush.bf16.msra.mxu0 %v1374
    %1454 = vmatpush.bf16.msra.mxu0 %v1373
    %1455 = vmatmul.bf16.gmra.mxu0 %v1163
    %v1456 = vpop.f32.mrf.mxu0
    %v1457 = vadd.f32 %v1444, %v1456
    %v1458 = vpop.f32.mrf.mxu0
    %1459 = vdwg.mxu0
    %1460 = vmatpush.bf16.msra.mxu0 %v1388
    %1461 = vmatpush.bf16.msra.mxu0 %v1387
    %1462 = vmatpush.bf16.msra.mxu0 %v1386
    %1463 = vmatpush.bf16.msra.mxu0 %v1385
    %1464 = vmatpush.bf16.msra.mxu0 %v1384
    %1465 = vmatpush.bf16.msra.mxu0 %v1383
    %1466 = vmatpush.bf16.msra.mxu0 %v1382
    %1467 = vmatpush.bf16.msra.mxu0 %v1381
    %1468 = vmatmul.bf16.gmra.mxu0 %v1164
    %v1469 = vpop.f32.mrf.mxu0
    %v1470 = vadd.f32 %v1457, %v1469
    %v1471 = vpop.f32.mrf.mxu0
    %1472 = vdwg.mxu0
    %v1473 = vmul.f32 %v1470, 0.5
    %v1474 = vmul.f32 %v1473, 1.442695
    %v1475 = vpow.pop %v1474
    %1477 = vrot.lane.b32.xlu0 %v1475, 112
    %v1478 = vpop.permute.xlu0 %1477
    %v1480 = vmul.f32 %v67, %v1478
    %v1481 = vadd.f32 %v1480, %v1470
    %v1482 = vpack.c.bf16 %v1481, %v1481
    %v1483 = vld [vmem:[%s5] sm:$0xff]
    %v1484 = vld [vmem:[%s5 + $0x8] sm:$0xff]
    %v1485 = vld [vmem:[%s5 + $0x10] sm:$0xff]
    %v1486 = vld [vmem:[%s5 + $0x18] sm:$0xff]
    %v1491 = vunpack.c.l.b16 %v1483
    %v1492 = vunpack.c.h.b16 %v1483
    %v1493 = vunpack.c.l.b16 %v1484
    %v1494 = vunpack.c.h.b16 %v1484
    %v1495 = vunpack.c.l.b16 %v1485
    %v1496 = vunpack.c.h.b16 %v1485
    %v1497 = vunpack.c.l.b16 %v1486
    %v1498 = vunpack.c.h.b16 %v1486
    %v1499 = vpack.c.b16 %v1495, %v1491
    %v1500 = vpack.c.b16 %v1496, %v1492
    %v1501 = vpack.c.b16 %v1497, %v1493
    %v1502 = vpack.c.b16 %v1498, %v1494
    %vm1507 = vcmask 130048
    %v1509 = vsel %vm1507, %v1482, 0
    %1511 = vmatpush.bf16.msra.mxu0 0
    %1512 = vmatpush.bf16.msra.mxu0 0
    %1513 = vmatpush.bf16.msra.mxu0 0
    %1514 = vmatpush.bf16.msra.mxu0 0
    %1515 = vmatpush.bf16.msra.mxu0 0
    %1516 = vmatpush.bf16.msra.mxu0 0
    %1517 = vmatpush.bf16.msra.mxu0 0
    %1518 = vmatpush.bf16.msra.mxu0 %v1499
    %1519 = vmatmul.bf16.gmra.mxu0 %v1509
    %v1520 = vpop.f32.mrf.mxu0
    %v1521 = vadd.f32 0.0, %v1520
    %v1522 = vpop.f32.mrf.mxu0
    %1523 = vdwg.mxu0
    %1524 = vmatpush.bf16.msra.mxu0 0
    %1525 = vmatpush.bf16.msra.mxu0 0
    %1526 = vmatpush.bf16.msra.mxu0 0
    %1527 = vmatpush.bf16.msra.mxu0 0
    %1528 = vmatpush.bf16.msra.mxu0 0
    %1529 = vmatpush.bf16.msra.mxu0 0
    %1530 = vmatpush.bf16.msra.mxu0 0
    %1531 = vmatpush.bf16.msra.mxu0 %v1500
    %1532 = vmatmul.bf16.gmra.mxu0 %v1509
    %v1533 = vpop.f32.mrf.mxu0
    %v1534 = vadd.f32 0.0, %v1533
    %v1535 = vpop.f32.mrf.mxu0
    %1536 = vdwg.mxu0
    %1537 = vmatpush.bf16.msra.mxu0 0
    %1538 = vmatpush.bf16.msra.mxu0 0
    %1539 = vmatpush.bf16.msra.mxu0 0
    %1540 = vmatpush.bf16.msra.mxu0 0
    %1541 = vmatpush.bf16.msra.mxu0 0
    %1542 = vmatpush.bf16.msra.mxu0 0
    %1543 = vmatpush.bf16.msra.mxu0 0
    %1544 = vmatpush.bf16.msra.mxu0 %v1501
    %1545 = vmatmul.bf16.gmra.mxu0 %v1509
    %v1546 = vpop.f32.mrf.mxu0
    %v1547 = vadd.f32 0.0, %v1546
    %v1548 = vpop.f32.mrf.mxu0
    %1549 = vdwg.mxu0
    %1550 = vmatpush.bf16.msra.mxu0 0
    %1551 = vmatpush.bf16.msra.mxu0 0
    %1552 = vmatpush.bf16.msra.mxu0 0
    %1553 = vmatpush.bf16.msra.mxu0 0
    %1554 = vmatpush.bf16.msra.mxu0 0
    %1555 = vmatpush.bf16.msra.mxu0 0
    %1556 = vmatpush.bf16.msra.mxu0 0
    %1557 = vmatpush.bf16.msra.mxu0 %v1502
    %1558 = vmatmul.bf16.gmra.mxu0 %v1509
    %v1559 = vpop.f32.mrf.mxu0
    %v1560 = vadd.f32 0.0, %v1559
    %v1561 = vpop.f32.mrf.mxu0
    %1562 = vdwg.mxu0
    %v1563 = vmax.f32 %v1521, 0.0
    %v1564 = vmax.f32 %v1534, 0.0
    %v1565 = vmax.f32 %v1547, 0.0
    %v1566 = vmax.f32 %v1560, 0.0
    %v1567 = vpack.c.bf16 %v1563, %v1563
    %v1568 = vpack.c.bf16 %v1564, %v1564
    %v1569 = vpack.c.bf16 %v1565, %v1565
    %v1570 = vpack.c.bf16 %v1566, %v1566
    %v1571 = vld [vmem:[#allocation5] sm:$0xff]
    %v1572 = vld [vmem:[#allocation5 + $0x8] sm:$0xff]
    %v1573 = vld [vmem:[#allocation5 + $0x10] sm:$0xff]
    %v1574 = vld [vmem:[#allocation5 + $0x18] sm:$0xff]
    %v1575 = vld [vmem:[#allocation5 + $0x20] sm:$0xff]
    %v1576 = vld [vmem:[#allocation5 + $0x28] sm:$0xff]
    %v1577 = vld [vmem:[#allocation5 + $0x30] sm:$0xff]
    %v1578 = vld [vmem:[#allocation5 + $0x38] sm:$0xff]
    %v1579 = vld [vmem:[#allocation5 + $0x40] sm:$0xff]
    %v1580 = vld [vmem:[#allocation5 + $0x48] sm:$0xff]
    %v1581 = vld [vmem:[#allocation5 + $0x50] sm:$0xff]
    %v1582 = vld [vmem:[#allocation5 + $0x58] sm:$0xff]
    %v1583 = vld [vmem:[#allocation5 + $0x60] sm:$0xff]
    %v1584 = vld [vmem:[#allocation5 + $0x68] sm:$0xff]
    %v1585 = vld [vmem:[#allocation5 + $0x70] sm:$0xff]
    %v1586 = vld [vmem:[#allocation5 + $0x78] sm:$0xff]
    %v1587 = vld [vmem:[#allocation5 + $0x80] sm:$0xff]
    %v1588 = vld [vmem:[#allocation5 + $0x88] sm:$0xff]
    %v1589 = vld [vmem:[#allocation5 + $0x90] sm:$0xff]
    %v1590 = vld [vmem:[#allocation5 + $0x98] sm:$0xff]
    %v1591 = vld [vmem:[#allocation5 + $0xa0] sm:$0xff]
    %v1592 = vld [vmem:[#allocation5 + $0xa8] sm:$0xff]
    %v1593 = vld [vmem:[#allocation5 + $0xb0] sm:$0xff]
    %v1594 = vld [vmem:[#allocation5 + $0xb8] sm:$0xff]
    %v1595 = vld [vmem:[#allocation5 + $0xc0] sm:$0xff]
    %v1596 = vld [vmem:[#allocation5 + $0xc8] sm:$0xff]
    %v1597 = vld [vmem:[#allocation5 + $0xd0] sm:$0xff]
    %v1598 = vld [vmem:[#allocation5 + $0xd8] sm:$0xff]
    %v1599 = vld [vmem:[#allocation5 + $0xe0] sm:$0xff]
    %v1600 = vld [vmem:[#allocation5 + $0xe8] sm:$0xff]
    %v1601 = vld [vmem:[#allocation5 + $0xf0] sm:$0xff]
    %v1602 = vld [vmem:[#allocation5 + $0xf8] sm:$0xff]
    %v1603 = vld [vmem:[#allocation5 + $0x100] sm:$0xff]
    %v1604 = vld [vmem:[#allocation5 + $0x108] sm:$0xff]
    %v1605 = vld [vmem:[#allocation5 + $0x110] sm:$0xff]
    %v1606 = vld [vmem:[#allocation5 + $0x118] sm:$0xff]
    %v1607 = vld [vmem:[#allocation5 + $0x120] sm:$0xff]
    %v1608 = vld [vmem:[#allocation5 + $0x128] sm:$0xff]
    %v1609 = vld [vmem:[#allocation5 + $0x130] sm:$0xff]
    %v1610 = vld [vmem:[#allocation5 + $0x138] sm:$0xff]
    %v1611 = vld [vmem:[#allocation5 + $0x140] sm:$0xff]
    %v1612 = vld [vmem:[#allocation5 + $0x148] sm:$0xff]
    %v1613 = vld [vmem:[#allocation5 + $0x150] sm:$0xff]
    %v1614 = vld [vmem:[#allocation5 + $0x158] sm:$0xff]
    %v1615 = vld [vmem:[#allocation5 + $0x160] sm:$0xff]
    %v1616 = vld [vmem:[#allocation5 + $0x168] sm:$0xff]
    %v1617 = vld [vmem:[#allocation5 + $0x170] sm:$0xff]
    %v1618 = vld [vmem:[#allocation5 + $0x178] sm:$0xff]
    %v1619 = vld [vmem:[#allocation5 + $0x180] sm:$0xff]
    %v1620 = vld [vmem:[#allocation5 + $0x188] sm:$0xff]
    %v1621 = vld [vmem:[#allocation5 + $0x190] sm:$0xff]
    %v1622 = vld [vmem:[#allocation5 + $0x198] sm:$0xff]
    %v1623 = vld [vmem:[#allocation5 + $0x1a0] sm:$0xff]
    %v1624 = vld [vmem:[#allocation5 + $0x1a8] sm:$0xff]
    %v1625 = vld [vmem:[#allocation5 + $0x1b0] sm:$0xff]
    %v1626 = vld [vmem:[#allocation5 + $0x1b8] sm:$0xff]
    %v1627 = vld [vmem:[#allocation5 + $0x1c0] sm:$0xff]
    %v1628 = vld [vmem:[#allocation5 + $0x1c8] sm:$0xff]
    %v1629 = vld [vmem:[#allocation5 + $0x1d0] sm:$0xff]
    %v1630 = vld [vmem:[#allocation5 + $0x1d8] sm:$0xff]
    %v1631 = vld [vmem:[#allocation5 + $0x1e0] sm:$0xff]
    %v1632 = vld [vmem:[#allocation5 + $0x1e8] sm:$0xff]
    %v1633 = vld [vmem:[#allocation5 + $0x1f0] sm:$0xff]
    %v1634 = vld [vmem:[#allocation5 + $0x1f8] sm:$0xff]
    %v1635 = vld [vmem:[#allocation5 + $0x200] sm:$0xff]
    %v1636 = vld [vmem:[#allocation5 + $0x208] sm:$0xff]
    %v1637 = vld [vmem:[#allocation5 + $0x210] sm:$0xff]
    %v1638 = vld [vmem:[#allocation5 + $0x218] sm:$0xff]
    %v1639 = vld [vmem:[#allocation5 + $0x220] sm:$0xff]
    %v1640 = vld [vmem:[#allocation5 + $0x228] sm:$0xff]
    %v1641 = vld [vmem:[#allocation5 + $0x230] sm:$0xff]
    %v1642 = vld [vmem:[#allocation5 + $0x238] sm:$0xff]
    %v1643 = vld [vmem:[#allocation5 + $0x240] sm:$0xff]
    %v1644 = vld [vmem:[#allocation5 + $0x248] sm:$0xff]
    %v1645 = vld [vmem:[#allocation5 + $0x250] sm:$0xff]
    %v1646 = vld [vmem:[#allocation5 + $0x258] sm:$0xff]
    %v1647 = vld [vmem:[#allocation5 + $0x260] sm:$0xff]
    %v1648 = vld [vmem:[#allocation5 + $0x268] sm:$0xff]
    %v1649 = vld [vmem:[#allocation5 + $0x270] sm:$0xff]
    %v1650 = vld [vmem:[#allocation5 + $0x278] sm:$0xff]
    %v1651 = vld [vmem:[#allocation5 + $0x280] sm:$0xff]
    %v1652 = vld [vmem:[#allocation5 + $0x288] sm:$0xff]
    %v1653 = vld [vmem:[#allocation5 + $0x290] sm:$0xff]
    %v1654 = vld [vmem:[#allocation5 + $0x298] sm:$0xff]
    %v1655 = vld [vmem:[#allocation5 + $0x2a0] sm:$0xff]
    %v1656 = vld [vmem:[#allocation5 + $0x2a8] sm:$0xff]
    %v1657 = vld [vmem:[#allocation5 + $0x2b0] sm:$0xff]
    %v1658 = vld [vmem:[#allocation5 + $0x2b8] sm:$0xff]
    %v1659 = vld [vmem:[#allocation5 + $0x2c0] sm:$0xff]
    %v1660 = vld [vmem:[#allocation5 + $0x2c8] sm:$0xff]
    %v1661 = vld [vmem:[#allocation5 + $0x2d0] sm:$0xff]
    %v1662 = vld [vmem:[#allocation5 + $0x2d8] sm:$0xff]
    %v1663 = vld [vmem:[#allocation5 + $0x2e0] sm:$0xff]
    %v1664 = vld [vmem:[#allocation5 + $0x2e8] sm:$0xff]
    %v1665 = vld [vmem:[#allocation5 + $0x2f0] sm:$0xff]
    %v1666 = vld [vmem:[#allocation5 + $0x2f8] sm:$0xff]
    %v1667 = vld [vmem:[#allocation5 + $0x300] sm:$0xff]
    %v1668 = vld [vmem:[#allocation5 + $0x308] sm:$0xff]
    %v1669 = vld [vmem:[#allocation5 + $0x310] sm:$0xff]
    %v1670 = vld [vmem:[#allocation5 + $0x318] sm:$0xff]
    %v1671 = vld [vmem:[#allocation5 + $0x320] sm:$0xff]
    %v1672 = vld [vmem:[#allocation5 + $0x328] sm:$0xff]
    %v1673 = vld [vmem:[#allocation5 + $0x330] sm:$0xff]
    %v1674 = vld [vmem:[#allocation5 + $0x338] sm:$0xff]
    %v1675 = vld [vmem:[#allocation5 + $0x340] sm:$0xff]
    %v1676 = vld [vmem:[#allocation5 + $0x348] sm:$0xff]
    %v1677 = vld [vmem:[#allocation5 + $0x350] sm:$0xff]
    %v1678 = vld [vmem:[#allocation5 + $0x358] sm:$0xff]
    %v1679 = vld [vmem:[#allocation5 + $0x360] sm:$0xff]
    %v1680 = vld [vmem:[#allocation5 + $0x368] sm:$0xff]
    %v1681 = vld [vmem:[#allocation5 + $0x370] sm:$0xff]
    %v1682 = vld [vmem:[#allocation5 + $0x378] sm:$0xff]
    %v1683 = vld [vmem:[#allocation5 + $0x380] sm:$0xff]
    %v1684 = vld [vmem:[#allocation5 + $0x388] sm:$0xff]
    %v1685 = vld [vmem:[#allocation5 + $0x390] sm:$0xff]
    %v1686 = vld [vmem:[#allocation5 + $0x398] sm:$0xff]
    %v1687 = vld [vmem:[#allocation5 + $0x3a0] sm:$0xff]
    %v1688 = vld [vmem:[#allocation5 + $0x3a8] sm:$0xff]
    %v1689 = vld [vmem:[#allocation5 + $0x3b0] sm:$0xff]
    %v1690 = vld [vmem:[#allocation5 + $0x3b8] sm:$0xff]
    %v1691 = vld [vmem:[#allocation5 + $0x3c0] sm:$0xff]
    %v1692 = vld [vmem:[#allocation5 + $0x3c8] sm:$0xff]
    %v1693 = vld [vmem:[#allocation5 + $0x3d0] sm:$0xff]
    %v1694 = vld [vmem:[#allocation5 + $0x3d8] sm:$0xff]
    %v1695 = vld [vmem:[#allocation5 + $0x3e0] sm:$0xff]
    %v1696 = vld [vmem:[#allocation5 + $0x3e8] sm:$0xff]
    %v1697 = vld [vmem:[#allocation5 + $0x3f0] sm:$0xff]
    %v1698 = vld [vmem:[#allocation5 + $0x3f8] sm:$0xff]
    %v1827 = vunpack.c.l.b16 %v1571
    %v1828 = vunpack.c.h.b16 %v1571
    %v1829 = vunpack.c.l.b16 %v1572
    %v1830 = vunpack.c.h.b16 %v1572
    %v1831 = vunpack.c.l.b16 %v1573
    %v1832 = vunpack.c.h.b16 %v1573
    %v1833 = vunpack.c.l.b16 %v1574
    %v1834 = vunpack.c.h.b16 %v1574
    %v1835 = vunpack.c.l.b16 %v1575
    %v1836 = vunpack.c.h.b16 %v1575
    %v1837 = vunpack.c.l.b16 %v1576
    %v1838 = vunpack.c.h.b16 %v1576
    %v1839 = vunpack.c.l.b16 %v1577
    %v1840 = vunpack.c.h.b16 %v1577
    %v1841 = vunpack.c.l.b16 %v1578
    %v1842 = vunpack.c.h.b16 %v1578
    %v1843 = vunpack.c.l.b16 %v1579
    %v1844 = vunpack.c.h.b16 %v1579
    %v1845 = vunpack.c.l.b16 %v1580
    %v1846 = vunpack.c.h.b16 %v1580
    %v1847 = vunpack.c.l.b16 %v1581
    %v1848 = vunpack.c.h.b16 %v1581
    %v1849 = vunpack.c.l.b16 %v1582
    %v1850 = vunpack.c.h.b16 %v1582
    %v1851 = vunpack.c.l.b16 %v1583
    %v1852 = vunpack.c.h.b16 %v1583
    %v1853 = vunpack.c.l.b16 %v1584
    %v1854 = vunpack.c.h.b16 %v1584
    %v1855 = vunpack.c.l.b16 %v1585
    %v1856 = vunpack.c.h.b16 %v1585
    %v1857 = vunpack.c.l.b16 %v1586
    %v1858 = vunpack.c.h.b16 %v1586
    %v1859 = vunpack.c.l.b16 %v1587
    %v1860 = vunpack.c.h.b16 %v1587
    %v1861 = vunpack.c.l.b16 %v1588
    %v1862 = vunpack.c.h.b16 %v1588
    %v1863 = vunpack.c.l.b16 %v1589
    %v1864 = vunpack.c.h.b16 %v1589
    %v1865 = vunpack.c.l.b16 %v1590
    %v1866 = vunpack.c.h.b16 %v1590
    %v1867 = vunpack.c.l.b16 %v1591
    %v1868 = vunpack.c.h.b16 %v1591
    %v1869 = vunpack.c.l.b16 %v1592
    %v1870 = vunpack.c.h.b16 %v1592
    %v1871 = vunpack.c.l.b16 %v1593
    %v1872 = vunpack.c.h.b16 %v1593
    %v1873 = vunpack.c.l.b16 %v1594
    %v1874 = vunpack.c.h.b16 %v1594
    %v1875 = vunpack.c.l.b16 %v1595
    %v1876 = vunpack.c.h.b16 %v1595
    %v1877 = vunpack.c.l.b16 %v1596
    %v1878 = vunpack.c.h.b16 %v1596
    %v1879 = vunpack.c.l.b16 %v1597
    %v1880 = vunpack.c.h.b16 %v1597
    %v1881 = vunpack.c.l.b16 %v1598
    %v1882 = vunpack.c.h.b16 %v1598
    %v1883 = vunpack.c.l.b16 %v1599
    %v1884 = vunpack.c.h.b16 %v1599
    %v1885 = vunpack.c.l.b16 %v1600
    %v1886 = vunpack.c.h.b16 %v1600
    %v1887 = vunpack.c.l.b16 %v1601
    %v1888 = vunpack.c.h.b16 %v1601
    %v1889 = vunpack.c.l.b16 %v1602
    %v1890 = vunpack.c.h.b16 %v1602
    %v1891 = vunpack.c.l.b16 %v1603
    %v1892 = vunpack.c.h.b16 %v1603
    %v1893 = vunpack.c.l.b16 %v1604
    %v1894 = vunpack.c.h.b16 %v1604
    %v1895 = vunpack.c.l.b16 %v1605
    %v1896 = vunpack.c.h.b16 %v1605
    %v1897 = vunpack.c.l.b16 %v1606
    %v1898 = vunpack.c.h.b16 %v1606
    %v1899 = vunpack.c.l.b16 %v1607
    %v1900 = vunpack.c.h.b16 %v1607
    %v1901 = vunpack.c.l.b16 %v1608
    %v1902 = vunpack.c.h.b16 %v1608
    %v1903 = vunpack.c.l.b16 %v1609
    %v1904 = vunpack.c.h.b16 %v1609
    %v1905 = vunpack.c.l.b16 %v1610
    %v1906 = vunpack.c.h.b16 %v1610
    %v1907 = vunpack.c.l.b16 %v1611
    %v1908 = vunpack.c.h.b16 %v1611
    %v1909 = vunpack.c.l.b16 %v1612
    %v1910 = vunpack.c.h.b16 %v1612
    %v1911 = vunpack.c.l.b16 %v1613
    %v1912 = vunpack.c.h.b16 %v1613
    %v1913 = vunpack.c.l.b16 %v1614
    %v1914 = vunpack.c.h.b16 %v1614
    %v1915 = vunpack.c.l.b16 %v1615
    %v1916 = vunpack.c.h.b16 %v1615
    %v1917 = vunpack.c.l.b16 %v1616
    %v1918 = vunpack.c.h.b16 %v1616
    %v1919 = vunpack.c.l.b16 %v1617
    %v1920 = vunpack.c.h.b16 %v1617
    %v1921 = vunpack.c.l.b16 %v1618
    %v1922 = vunpack.c.h.b16 %v1618
    %v1923 = vunpack.c.l.b16 %v1619
    %v1924 = vunpack.c.h.b16 %v1619
    %v1925 = vunpack.c.l.b16 %v1620
    %v1926 = vunpack.c.h.b16 %v1620
    %v1927 = vunpack.c.l.b16 %v1621
    %v1928 = vunpack.c.h.b16 %v1621
    %v1929 = vunpack.c.l.b16 %v1622
    %v1930 = vunpack.c.h.b16 %v1622
    %v1931 = vunpack.c.l.b16 %v1623
    %v1932 = vunpack.c.h.b16 %v1623
    %v1933 = vunpack.c.l.b16 %v1624
    %v1934 = vunpack.c.h.b16 %v1624
    %v1935 = vunpack.c.l.b16 %v1625
    %v1936 = vunpack.c.h.b16 %v1625
    %v1937 = vunpack.c.l.b16 %v1626
    %v1938 = vunpack.c.h.b16 %v1626
    %v1939 = vunpack.c.l.b16 %v1627
    %v1940 = vunpack.c.h.b16 %v1627
    %v1941 = vunpack.c.l.b16 %v1628
    %v1942 = vunpack.c.h.b16 %v1628
    %v1943 = vunpack.c.l.b16 %v1629
    %v1944 = vunpack.c.h.b16 %v1629
    %v1945 = vunpack.c.l.b16 %v1630
    %v1946 = vunpack.c.h.b16 %v1630
    %v1947 = vunpack.c.l.b16 %v1631
    %v1948 = vunpack.c.h.b16 %v1631
    %v1949 = vunpack.c.l.b16 %v1632
    %v1950 = vunpack.c.h.b16 %v1632
    %v1951 = vunpack.c.l.b16 %v1633
    %v1952 = vunpack.c.h.b16 %v1633
    %v1953 = vunpack.c.l.b16 %v1634
    %v1954 = vunpack.c.h.b16 %v1634
    %v1955 = vunpack.c.l.b16 %v1635
    %v1956 = vunpack.c.h.b16 %v1635
    %v1957 = vunpack.c.l.b16 %v1636
    %v1958 = vunpack.c.h.b16 %v1636
    %v1959 = vunpack.c.l.b16 %v1637
    %v1960 = vunpack.c.h.b16 %v1637
    %v1961 = vunpack.c.l.b16 %v1638
    %v1962 = vunpack.c.h.b16 %v1638
    %v1963 = vunpack.c.l.b16 %v1639
    %v1964 = vunpack.c.h.b16 %v1639
    %v1965 = vunpack.c.l.b16 %v1640
    %v1966 = vunpack.c.h.b16 %v1640
    %v1967 = vunpack.c.l.b16 %v1641
    %v1968 = vunpack.c.h.b16 %v1641
    %v1969 = vunpack.c.l.b16 %v1642
    %v1970 = vunpack.c.h.b16 %v1642
    %v1971 = vunpack.c.l.b16 %v1643
    %v1972 = vunpack.c.h.b16 %v1643
    %v1973 = vunpack.c.l.b16 %v1644
    %v1974 = vunpack.c.h.b16 %v1644
    %v1975 = vunpack.c.l.b16 %v1645
    %v1976 = vunpack.c.h.b16 %v1645
    %v1977 = vunpack.c.l.b16 %v1646
    %v1978 = vunpack.c.h.b16 %v1646
    %v1979 = vunpack.c.l.b16 %v1647
    %v1980 = vunpack.c.h.b16 %v1647
    %v1981 = vunpack.c.l.b16 %v1648
    %v1982 = vunpack.c.h.b16 %v1648
    %v1983 = vunpack.c.l.b16 %v1649
    %v1984 = vunpack.c.h.b16 %v1649
    %v1985 = vunpack.c.l.b16 %v1650
    %v1986 = vunpack.c.h.b16 %v1650
    %v1987 = vunpack.c.l.b16 %v1651
    %v1988 = vunpack.c.h.b16 %v1651
    %v1989 = vunpack.c.l.b16 %v1652
    %v1990 = vunpack.c.h.b16 %v1652
    %v1991 = vunpack.c.l.b16 %v1653
    %v1992 = vunpack.c.h.b16 %v1653
    %v1993 = vunpack.c.l.b16 %v1654
    %v1994 = vunpack.c.h.b16 %v1654
    %v1995 = vunpack.c.l.b16 %v1655
    %v1996 = vunpack.c.h.b16 %v1655
    %v1997 = vunpack.c.l.b16 %v1656
    %v1998 = vunpack.c.h.b16 %v1656
    %v1999 = vunpack.c.l.b16 %v1657
    %v2000 = vunpack.c.h.b16 %v1657
    %v2001 = vunpack.c.l.b16 %v1658
    %v2002 = vunpack.c.h.b16 %v1658
    %v2003 = vunpack.c.l.b16 %v1659
    %v2004 = vunpack.c.h.b16 %v1659
    %v2005 = vunpack.c.l.b16 %v1660
    %v2006 = vunpack.c.h.b16 %v1660
    %v2007 = vunpack.c.l.b16 %v1661
    %v2008 = vunpack.c.h.b16 %v1661
    %v2009 = vunpack.c.l.b16 %v1662
    %v2010 = vunpack.c.h.b16 %v1662
    %v2011 = vunpack.c.l.b16 %v1663
    %v2012 = vunpack.c.h.b16 %v1663
    %v2013 = vunpack.c.l.b16 %v1664
    %v2014 = vunpack.c.h.b16 %v1664
    %v2015 = vunpack.c.l.b16 %v1665
    %v2016 = vunpack.c.h.b16 %v1665
    %v2017 = vunpack.c.l.b16 %v1666
    %v2018 = vunpack.c.h.b16 %v1666
    %v2019 = vunpack.c.l.b16 %v1667
    %v2020 = vunpack.c.h.b16 %v1667
    %v2021 = vunpack.c.l.b16 %v1668
    %v2022 = vunpack.c.h.b16 %v1668
    %v2023 = vunpack.c.l.b16 %v1669
    %v2024 = vunpack.c.h.b16 %v1669
    %v2025 = vunpack.c.l.b16 %v1670
    %v2026 = vunpack.c.h.b16 %v1670
    %v2027 = vunpack.c.l.b16 %v1671
    %v2028 = vunpack.c.h.b16 %v1671
    %v2029 = vunpack.c.l.b16 %v1672
    %v2030 = vunpack.c.h.b16 %v1672
    %v2031 = vunpack.c.l.b16 %v1673
    %v2032 = vunpack.c.h.b16 %v1673
    %v2033 = vunpack.c.l.b16 %v1674
    %v2034 = vunpack.c.h.b16 %v1674
    %v2035 = vunpack.c.l.b16 %v1675
    %v2036 = vunpack.c.h.b16 %v1675
    %v2037 = vunpack.c.l.b16 %v1676
    %v2038 = vunpack.c.h.b16 %v1676
    %v2039 = vunpack.c.l.b16 %v1677
    %v2040 = vunpack.c.h.b16 %v1677
    %v2041 = vunpack.c.l.b16 %v1678
    %v2042 = vunpack.c.h.b16 %v1678
    %v2043 = vunpack.c.l.b16 %v1679
    %v2044 = vunpack.c.h.b16 %v1679
    %v2045 = vunpack.c.l.b16 %v1680
    %v2046 = vunpack.c.h.b16 %v1680
    %v2047 = vunpack.c.l.b16 %v1681
    %v2048 = vunpack.c.h.b16 %v1681
    %v2049 = vunpack.c.l.b16 %v1682
    %v2050 = vunpack.c.h.b16 %v1682
    %v2051 = vunpack.c.l.b16 %v1683
    %v2052 = vunpack.c.h.b16 %v1683
    %v2053 = vunpack.c.l.b16 %v1684
    %v2054 = vunpack.c.h.b16 %v1684
    %v2055 = vunpack.c.l.b16 %v1685
    %v2056 = vunpack.c.h.b16 %v1685
    %v2057 = vunpack.c.l.b16 %v1686
    %v2058 = vunpack.c.h.b16 %v1686
    %v2059 = vunpack.c.l.b16 %v1687
    %v2060 = vunpack.c.h.b16 %v1687
    %v2061 = vunpack.c.l.b16 %v1688
    %v2062 = vunpack.c.h.b16 %v1688
    %v2063 = vunpack.c.l.b16 %v1689
    %v2064 = vunpack.c.h.b16 %v1689
    %v2065 = vunpack.c.l.b16 %v1690
    %v2066 = vunpack.c.h.b16 %v1690
    %v2067 = vunpack.c.l.b16 %v1691
    %v2068 = vunpack.c.h.b16 %v1691
    %v2069 = vunpack.c.l.b16 %v1692
    %v2070 = vunpack.c.h.b16 %v1692
    %v2071 = vunpack.c.l.b16 %v1693
    %v2072 = vunpack.c.h.b16 %v1693
    %v2073 = vunpack.c.l.b16 %v1694
    %v2074 = vunpack.c.h.b16 %v1694
    %v2075 = vunpack.c.l.b16 %v1695
    %v2076 = vunpack.c.h.b16 %v1695
    %v2077 = vunpack.c.l.b16 %v1696
    %v2078 = vunpack.c.h.b16 %v1696
    %v2079 = vunpack.c.l.b16 %v1697
    %v2080 = vunpack.c.h.b16 %v1697
    %v2081 = vunpack.c.l.b16 %v1698
    %v2082 = vunpack.c.h.b16 %v1698
    %v2083 = vpack.c.b16 %v1831, %v1827
    %v2084 = vpack.c.b16 %v1832, %v1828
    %v2085 = vpack.c.b16 %v1833, %v1829
    %v2086 = vpack.c.b16 %v1834, %v1830
    %v2087 = vpack.c.b16 %v1839, %v1835
    %v2088 = vpack.c.b16 %v1840, %v1836
    %v2089 = vpack.c.b16 %v1841, %v1837
    %v2090 = vpack.c.b16 %v1842, %v1838
    %v2091 = vpack.c.b16 %v1847, %v1843
    %v2092 = vpack.c.b16 %v1848, %v1844
    %v2093 = vpack.c.b16 %v1849, %v1845
    %v2094 = vpack.c.b16 %v1850, %v1846
    %v2095 = vpack.c.b16 %v1855, %v1851
    %v2096 = vpack.c.b16 %v1856, %v1852
    %v2097 = vpack.c.b16 %v1857, %v1853
    %v2098 = vpack.c.b16 %v1858, %v1854
    %v2099 = vpack.c.b16 %v1863, %v1859
    %v2100 = vpack.c.b16 %v1864, %v1860
    %v2101 = vpack.c.b16 %v1865, %v1861
    %v2102 = vpack.c.b16 %v1866, %v1862
    %v2103 = vpack.c.b16 %v1871, %v1867
    %v2104 = vpack.c.b16 %v1872, %v1868
    %v2105 = vpack.c.b16 %v1873, %v1869
    %v2106 = vpack.c.b16 %v1874, %v1870
    %v2107 = vpack.c.b16 %v1879, %v1875
    %v2108 = vpack.c.b16 %v1880, %v1876
    %v2109 = vpack.c.b16 %v1881, %v1877
    %v2110 = vpack.c.b16 %v1882, %v1878
    %v2111 = vpack.c.b16 %v1887, %v1883
    %v2112 = vpack.c.b16 %v1888, %v1884
    %v2113 = vpack.c.b16 %v1889, %v1885
    %v2114 = vpack.c.b16 %v1890, %v1886
    %v2115 = vpack.c.b16 %v1895, %v1891
    %v2116 = vpack.c.b16 %v1896, %v1892
    %v2117 = vpack.c.b16 %v1897, %v1893
    %v2118 = vpack.c.b16 %v1898, %v1894
    %v2119 = vpack.c.b16 %v1903, %v1899
    %v2120 = vpack.c.b16 %v1904, %v1900
    %v2121 = vpack.c.b16 %v1905, %v1901
    %v2122 = vpack.c.b16 %v1906, %v1902
    %v2123 = vpack.c.b16 %v1911, %v1907
    %v2124 = vpack.c.b16 %v1912, %v1908
    %v2125 = vpack.c.b16 %v1913, %v1909
    %v2126 = vpack.c.b16 %v1914, %v1910
    %v2127 = vpack.c.b16 %v1919, %v1915
    %v2128 = vpack.c.b16 %v1920, %v1916
    %v2129 = vpack.c.b16 %v1921, %v1917
    %v2130 = vpack.c.b16 %v1922, %v1918
    %v2131 = vpack.c.b16 %v1927, %v1923
    %v2132 = vpack.c.b16 %v1928, %v1924
    %v2133 = vpack.c.b16 %v1929, %v1925
    %v2134 = vpack.c.b16 %v1930, %v1926
    %v2135 = vpack.c.b16 %v1935, %v1931
    %v2136 = vpack.c.b16 %v1936, %v1932
    %v2137 = vpack.c.b16 %v1937, %v1933
    %v2138 = vpack.c.b16 %v1938, %v1934
    %v2139 = vpack.c.b16 %v1943, %v1939
    %v2140 = vpack.c.b16 %v1944, %v1940
    %v2141 = vpack.c.b16 %v1945, %v1941
    %v2142 = vpack.c.b16 %v1946, %v1942
    %v2143 = vpack.c.b16 %v1951, %v1947
    %v2144 = vpack.c.b16 %v1952, %v1948
    %v2145 = vpack.c.b16 %v1953, %v1949
    %v2146 = vpack.c.b16 %v1954, %v1950
    %v2147 = vpack.c.b16 %v1959, %v1955
    %v2148 = vpack.c.b16 %v1960, %v1956
    %v2149 = vpack.c.b16 %v1961, %v1957
    %v2150 = vpack.c.b16 %v1962, %v1958
    %v2151 = vpack.c.b16 %v1967, %v1963
    %v2152 = vpack.c.b16 %v1968, %v1964
    %v2153 = vpack.c.b16 %v1969, %v1965
    %v2154 = vpack.c.b16 %v1970, %v1966
    %v2155 = vpack.c.b16 %v1975, %v1971
    %v2156 = vpack.c.b16 %v1976, %v1972
    %v2157 = vpack.c.b16 %v1977, %v1973
    %v2158 = vpack.c.b16 %v1978, %v1974
    %v2159 = vpack.c.b16 %v1983, %v1979
    %v2160 = vpack.c.b16 %v1984, %v1980
    %v2161 = vpack.c.b16 %v1985, %v1981
    %v2162 = vpack.c.b16 %v1986, %v1982
    %v2163 = vpack.c.b16 %v1991, %v1987
    %v2164 = vpack.c.b16 %v1992, %v1988
    %v2165 = vpack.c.b16 %v1993, %v1989
    %v2166 = vpack.c.b16 %v1994, %v1990
    %v2167 = vpack.c.b16 %v1999, %v1995
    %v2168 = vpack.c.b16 %v2000, %v1996
    %v2169 = vpack.c.b16 %v2001, %v1997
    %v2170 = vpack.c.b16 %v2002, %v1998
    %v2171 = vpack.c.b16 %v2007, %v2003
    %v2172 = vpack.c.b16 %v2008, %v2004
    %v2173 = vpack.c.b16 %v2009, %v2005
    %v2174 = vpack.c.b16 %v2010, %v2006
    %v2175 = vpack.c.b16 %v2015, %v2011
    %v2176 = vpack.c.b16 %v2016, %v2012
    %v2177 = vpack.c.b16 %v2017, %v2013
    %v2178 = vpack.c.b16 %v2018, %v2014
    %v2179 = vpack.c.b16 %v2023, %v2019
    %v2180 = vpack.c.b16 %v2024, %v2020
    %v2181 = vpack.c.b16 %v2025, %v2021
    %v2182 = vpack.c.b16 %v2026, %v2022
    %v2183 = vpack.c.b16 %v2031, %v2027
    %v2184 = vpack.c.b16 %v2032, %v2028
    %v2185 = vpack.c.b16 %v2033, %v2029
    %v2186 = vpack.c.b16 %v2034, %v2030
    %v2187 = vpack.c.b16 %v2039, %v2035
    %v2188 = vpack.c.b16 %v2040, %v2036
    %v2189 = vpack.c.b16 %v2041, %v2037
    %v2190 = vpack.c.b16 %v2042, %v2038
    %v2191 = vpack.c.b16 %v2047, %v2043
    %v2192 = vpack.c.b16 %v2048, %v2044
    %v2193 = vpack.c.b16 %v2049, %v2045
    %v2194 = vpack.c.b16 %v2050, %v2046
    %v2195 = vpack.c.b16 %v2055, %v2051
    %v2196 = vpack.c.b16 %v2056, %v2052
    %v2197 = vpack.c.b16 %v2057, %v2053
    %v2198 = vpack.c.b16 %v2058, %v2054
    %v2199 = vpack.c.b16 %v2063, %v2059
    %v2200 = vpack.c.b16 %v2064, %v2060
    %v2201 = vpack.c.b16 %v2065, %v2061
    %v2202 = vpack.c.b16 %v2066, %v2062
    %v2203 = vpack.c.b16 %v2071, %v2067
    %v2204 = vpack.c.b16 %v2072, %v2068
    %v2205 = vpack.c.b16 %v2073, %v2069
    %v2206 = vpack.c.b16 %v2074, %v2070
    %v2207 = vpack.c.b16 %v2079, %v2075
    %v2208 = vpack.c.b16 %v2080, %v2076
    %v2209 = vpack.c.b16 %v2081, %v2077
    %v2210 = vpack.c.b16 %v2082, %v2078
    %2339 = vmatpush.bf16.msra.mxu0 %v2111
    %2340 = vmatpush.bf16.msra.mxu0 %v2107
    %2341 = vmatpush.bf16.msra.mxu0 %v2103
    %2342 = vmatpush.bf16.msra.mxu0 %v2099
    %2343 = vmatpush.bf16.msra.mxu0 %v2095
    %2344 = vmatpush.bf16.msra.mxu0 %v2091
    %2345 = vmatpush.bf16.msra.mxu0 %v2087
    %2346 = vmatpush.bf16.msra.mxu0 %v2083
    %2347 = vmatmul.bf16.gmra.mxu0 %v1567
    %v2348 = vpop.f32.mrf.mxu0
    %v2349 = vadd.f32 0.0, %v2348
    %v2350 = vpop.f32.mrf.mxu0
    %2351 = vdwg.mxu0
    %2352 = vmatpush.bf16.msra.mxu0 %v2143
    %2353 = vmatpush.bf16.msra.mxu0 %v2139
    %2354 = vmatpush.bf16.msra.mxu0 %v2135
    %2355 = vmatpush.bf16.msra.mxu0 %v2131
    %2356 = vmatpush.bf16.msra.mxu0 %v2127
    %2357 = vmatpush.bf16.msra.mxu0 %v2123
    %2358 = vmatpush.bf16.msra.mxu0 %v2119
    %2359 = vmatpush.bf16.msra.mxu0 %v2115
    %2360 = vmatmul.bf16.gmra.mxu0 %v1568
    %v2361 = vpop.f32.mrf.mxu0
    %v2362 = vadd.f32 %v2349, %v2361
    %v2363 = vpop.f32.mrf.mxu0
    %2364 = vdwg.mxu0
    %2365 = vmatpush.bf16.msra.mxu0 %v2175
    %2366 = vmatpush.bf16.msra.mxu0 %v2171
    %2367 = vmatpush.bf16.msra.mxu0 %v2167
    %2368 = vmatpush.bf16.msra.mxu0 %v2163
    %2369 = vmatpush.bf16.msra.mxu0 %v2159
    %2370 = vmatpush.bf16.msra.mxu0 %v2155
    %2371 = vmatpush.bf16.msra.mxu0 %v2151
    %2372 = vmatpush.bf16.msra.mxu0 %v2147
    %2373 = vmatmul.bf16.gmra.mxu0 %v1569
    %v2374 = vpop.f32.mrf.mxu0
    %v2375 = vadd.f32 %v2362, %v2374
    %v2376 = vpop.f32.mrf.mxu0
    %2377 = vdwg.mxu0
    %2378 = vmatpush.bf16.msra.mxu0 %v2207
    %2379 = vmatpush.bf16.msra.mxu0 %v2203
    %2380 = vmatpush.bf16.msra.mxu0 %v2199
    %2381 = vmatpush.bf16.msra.mxu0 %v2195
    %2382 = vmatpush.bf16.msra.mxu0 %v2191
    %2383 = vmatpush.bf16.msra.mxu0 %v2187
    %2384 = vmatpush.bf16.msra.mxu0 %v2183
    %2385 = vmatpush.bf16.msra.mxu0 %v2179
    %2386 = vmatmul.bf16.gmra.mxu0 %v1570
    %v2387 = vpop.f32.mrf.mxu0
    %v2388 = vadd.f32 %v2375, %v2387
    %v2389 = vpop.f32.mrf.mxu0
    %2390 = vdwg.mxu0
    %2391 = vmatpush.bf16.msra.mxu0 %v2112
    %2392 = vmatpush.bf16.msra.mxu0 %v2108
    %2393 = vmatpush.bf16.msra.mxu0 %v2104
    %2394 = vmatpush.bf16.msra.mxu0 %v2100
    %2395 = vmatpush.bf16.msra.mxu0 %v2096
    %2396 = vmatpush.bf16.msra.mxu0 %v2092
    %2397 = vmatpush.bf16.msra.mxu0 %v2088
    %2398 = vmatpush.bf16.msra.mxu0 %v2084
    %2399 = vmatmul.bf16.gmra.mxu0 %v1567
    %v2400 = vpop.f32.mrf.mxu0
    %v2401 = vadd.f32 0.0, %v2400
    %v2402 = vpop.f32.mrf.mxu0
    %2403 = vdwg.mxu0
    %2404 = vmatpush.bf16.msra.mxu0 %v2144
    %2405 = vmatpush.bf16.msra.mxu0 %v2140
    %2406 = vmatpush.bf16.msra.mxu0 %v2136
    %2407 = vmatpush.bf16.msra.mxu0 %v2132
    %2408 = vmatpush.bf16.msra.mxu0 %v2128
    %2409 = vmatpush.bf16.msra.mxu0 %v2124
    %2410 = vmatpush.bf16.msra.mxu0 %v2120
    %2411 = vmatpush.bf16.msra.mxu0 %v2116
    %2412 = vmatmul.bf16.gmra.mxu0 %v1568
    %v2413 = vpop.f32.mrf.mxu0
    %v2414 = vadd.f32 %v2401, %v2413
    %v2415 = vpop.f32.mrf.mxu0
    %2416 = vdwg.mxu0
    %2417 = vmatpush.bf16.msra.mxu0 %v2176
    %2418 = vmatpush.bf16.msra.mxu0 %v2172
    %2419 = vmatpush.bf16.msra.mxu0 %v2168
    %2420 = vmatpush.bf16.msra.mxu0 %v2164
    %2421 = vmatpush.bf16.msra.mxu0 %v2160
    %2422 = vmatpush.bf16.msra.mxu0 %v2156
    %2423 = vmatpush.bf16.msra.mxu0 %v2152
    %2424 = vmatpush.bf16.msra.mxu0 %v2148
    %2425 = vmatmul.bf16.gmra.mxu0 %v1569
    %v2426 = vpop.f32.mrf.mxu0
    %v2427 = vadd.f32 %v2414, %v2426
    %v2428 = vpop.f32.mrf.mxu0
    %2429 = vdwg.mxu0
    %2430 = vmatpush.bf16.msra.mxu0 %v2208
    %2431 = vmatpush.bf16.msra.mxu0 %v2204
    %2432 = vmatpush.bf16.msra.mxu0 %v2200
    %2433 = vmatpush.bf16.msra.mxu0 %v2196
    %2434 = vmatpush.bf16.msra.mxu0 %v2192
    %2435 = vmatpush.bf16.msra.mxu0 %v2188
    %2436 = vmatpush.bf16.msra.mxu0 %v2184
    %2437 = vmatpush.bf16.msra.mxu0 %v2180
    %2438 = vmatmul.bf16.gmra.mxu0 %v1570
    %v2439 = vpop.f32.mrf.mxu0
    %v2440 = vadd.f32 %v2427, %v2439
    %v2441 = vpop.f32.mrf.mxu0
    %2442 = vdwg.mxu0
    %2443 = vmatpush.bf16.msra.mxu0 %v2113
    %2444 = vmatpush.bf16.msra.mxu0 %v2109
    %2445 = vmatpush.bf16.msra.mxu0 %v2105
    %2446 = vmatpush.bf16.msra.mxu0 %v2101
    %2447 = vmatpush.bf16.msra.mxu0 %v2097
    %2448 = vmatpush.bf16.msra.mxu0 %v2093
    %2449 = vmatpush.bf16.msra.mxu0 %v2089
    %2450 = vmatpush.bf16.msra.mxu0 %v2085
    %2451 = vmatmul.bf16.gmra.mxu0 %v1567
    %v2452 = vpop.f32.mrf.mxu0
    %v2453 = vadd.f32 0.0, %v2452
    %v2454 = vpop.f32.mrf.mxu0
    %2455 = vdwg.mxu0
    %2456 = vmatpush.bf16.msra.mxu0 %v2145
    %2457 = vmatpush.bf16.msra.mxu0 %v2141
    %2458 = vmatpush.bf16.msra.mxu0 %v2137
    %2459 = vmatpush.bf16.msra.mxu0 %v2133
    %2460 = vmatpush.bf16.msra.mxu0 %v2129
    %2461 = vmatpush.bf16.msra.mxu0 %v2125
    %2462 = vmatpush.bf16.msra.mxu0 %v2121
    %2463 = vmatpush.bf16.msra.mxu0 %v2117
    %2464 = vmatmul.bf16.gmra.mxu0 %v1568
    %v2465 = vpop.f32.mrf.mxu0
    %v2466 = vadd.f32 %v2453, %v2465
    %v2467 = vpop.f32.mrf.mxu0
    %2468 = vdwg.mxu0
    %2469 = vmatpush.bf16.msra.mxu0 %v2177
    %2470 = vmatpush.bf16.msra.mxu0 %v2173
    %2471 = vmatpush.bf16.msra.mxu0 %v2169
    %2472 = vmatpush.bf16.msra.mxu0 %v2165
    %2473 = vmatpush.bf16.msra.mxu0 %v2161
    %2474 = vmatpush.bf16.msra.mxu0 %v2157
    %2475 = vmatpush.bf16.msra.mxu0 %v2153
    %2476 = vmatpush.bf16.msra.mxu0 %v2149
    %2477 = vmatmul.bf16.gmra.mxu0 %v1569
    %v2478 = vpop.f32.mrf.mxu0
    %v2479 = vadd.f32 %v2466, %v2478
    %v2480 = vpop.f32.mrf.mxu0
    %2481 = vdwg.mxu0
    %2482 = vmatpush.bf16.msra.mxu0 %v2209
    %2483 = vmatpush.bf16.msra.mxu0 %v2205
    %2484 = vmatpush.bf16.msra.mxu0 %v2201
    %2485 = vmatpush.bf16.msra.mxu0 %v2197
    %2486 = vmatpush.bf16.msra.mxu0 %v2193
    %2487 = vmatpush.bf16.msra.mxu0 %v2189
    %2488 = vmatpush.bf16.msra.mxu0 %v2185
    %2489 = vmatpush.bf16.msra.mxu0 %v2181
    %2490 = vmatmul.bf16.gmra.mxu0 %v1570
    %v2491 = vpop.f32.mrf.mxu0
    %v2492 = vadd.f32 %v2479, %v2491
    %v2493 = vpop.f32.mrf.mxu0
    %2494 = vdwg.mxu0
    %2495 = vmatpush.bf16.msra.mxu0 %v2114
    %2496 = vmatpush.bf16.msra.mxu0 %v2110
    %2497 = vmatpush.bf16.msra.mxu0 %v2106
    %2498 = vmatpush.bf16.msra.mxu0 %v2102
    %2499 = vmatpush.bf16.msra.mxu0 %v2098
    %2500 = vmatpush.bf16.msra.mxu0 %v2094
    %2501 = vmatpush.bf16.msra.mxu0 %v2090
    %2502 = vmatpush.bf16.msra.mxu0 %v2086
    %2503 = vmatmul.bf16.gmra.mxu0 %v1567
    %v2504 = vpop.f32.mrf.mxu0
    %v2505 = vadd.f32 0.0, %v2504
    %v2506 = vpop.f32.mrf.mxu0
    %2507 = vdwg.mxu0
    %2508 = vmatpush.bf16.msra.mxu0 %v2146
    %2509 = vmatpush.bf16.msra.mxu0 %v2142
    %2510 = vmatpush.bf16.msra.mxu0 %v2138
    %2511 = vmatpush.bf16.msra.mxu0 %v2134
    %2512 = vmatpush.bf16.msra.mxu0 %v2130
    %2513 = vmatpush.bf16.msra.mxu0 %v2126
    %2514 = vmatpush.bf16.msra.mxu0 %v2122
    %2515 = vmatpush.bf16.msra.mxu0 %v2118
    %2516 = vmatmul.bf16.gmra.mxu0 %v1568
    %v2517 = vpop.f32.mrf.mxu0
    %v2518 = vadd.f32 %v2505, %v2517
    %v2519 = vpop.f32.mrf.mxu0
    %2520 = vdwg.mxu0
    %2521 = vmatpush.bf16.msra.mxu0 %v2178
    %2522 = vmatpush.bf16.msra.mxu0 %v2174
    %2523 = vmatpush.bf16.msra.mxu0 %v2170
    %2524 = vmatpush.bf16.msra.mxu0 %v2166
    %2525 = vmatpush.bf16.msra.mxu0 %v2162
    %2526 = vmatpush.bf16.msra.mxu0 %v2158
    %2527 = vmatpush.bf16.msra.mxu0 %v2154
    %2528 = vmatpush.bf16.msra.mxu0 %v2150
    %2529 = vmatmul.bf16.gmra.mxu0 %v1569
    %v2530 = vpop.f32.mrf.mxu0
    %v2531 = vadd.f32 %v2518, %v2530
    %v2532 = vpop.f32.mrf.mxu0
    %2533 = vdwg.mxu0
    %2534 = vmatpush.bf16.msra.mxu0 %v2210
    %2535 = vmatpush.bf16.msra.mxu0 %v2206
    %2536 = vmatpush.bf16.msra.mxu0 %v2202
    %2537 = vmatpush.bf16.msra.mxu0 %v2198
    %2538 = vmatpush.bf16.msra.mxu0 %v2194
    %2539 = vmatpush.bf16.msra.mxu0 %v2190
    %2540 = vmatpush.bf16.msra.mxu0 %v2186
    %2541 = vmatpush.bf16.msra.mxu0 %v2182
    %2542 = vmatmul.bf16.gmra.mxu0 %v1570
    %v2543 = vpop.f32.mrf.mxu0
    %v2544 = vadd.f32 %v2531, %v2543
    %v2545 = vpop.f32.mrf.mxu0
    %2546 = vdwg.mxu0
    %v2547 = vmax.f32 %v2388, 0.0
    %v2548 = vmax.f32 %v2440, 0.0
    %v2549 = vmax.f32 %v2492, 0.0
    %v2550 = vmax.f32 %v2544, 0.0
    %v2551 = vpack.c.bf16 %v2547, %v2547
    %v2552 = vpack.c.bf16 %v2548, %v2548
    %v2553 = vpack.c.bf16 %v2549, %v2549
    %v2554 = vpack.c.bf16 %v2550, %v2550
    %v2555 = vld [vmem:[%s7] sm:$0xf]
    %v2556 = vld [vmem:[%s7 + $0x4] sm:$0xf]
    %v2557 = vld [vmem:[%s7 + $0x8] sm:$0xf]
    %v2558 = vld [vmem:[%s7 + $0xc] sm:$0xf]
    %v2559 = vld [vmem:[%s7 + $0x10] sm:$0xf]
    %v2560 = vld [vmem:[%s7 + $0x14] sm:$0xf]
    %v2561 = vld [vmem:[%s7 + $0x18] sm:$0xf]
    %v2562 = vld [vmem:[%s7 + $0x1c] sm:$0xf]
    %v2563 = vld [vmem:[%s7 + $0x20] sm:$0xf]
    %v2564 = vld [vmem:[%s7 + $0x24] sm:$0xf]
    %v2565 = vld [vmem:[%s7 + $0x28] sm:$0xf]
    %v2566 = vld [vmem:[%s7 + $0x2c] sm:$0xf]
    %v2567 = vld [vmem:[%s7 + $0x30] sm:$0xf]
    %v2568 = vld [vmem:[%s7 + $0x34] sm:$0xf]
    %v2569 = vld [vmem:[%s7 + $0x38] sm:$0xf]
    %v2570 = vld [vmem:[%s7 + $0x3c] sm:$0xf]
    %v2571 = vld [vmem:[%s7 + $0x40] sm:$0xf]
    %v2572 = vld [vmem:[%s7 + $0x44] sm:$0xf]
    %v2573 = vld [vmem:[%s7 + $0x48] sm:$0xf]
    %v2574 = vld [vmem:[%s7 + $0x4c] sm:$0xf]
    %v2575 = vld [vmem:[%s7 + $0x50] sm:$0xf]
    %v2576 = vld [vmem:[%s7 + $0x54] sm:$0xf]
    %v2577 = vld [vmem:[%s7 + $0x58] sm:$0xf]
    %v2578 = vld [vmem:[%s7 + $0x5c] sm:$0xf]
    %v2579 = vld [vmem:[%s7 + $0x60] sm:$0xf]
    %v2580 = vld [vmem:[%s7 + $0x64] sm:$0xf]
    %v2581 = vld [vmem:[%s7 + $0x68] sm:$0xf]
    %v2582 = vld [vmem:[%s7 + $0x6c] sm:$0xf]
    %v2583 = vld [vmem:[%s7 + $0x70] sm:$0xf]
    %v2584 = vld [vmem:[%s7 + $0x74] sm:$0xf]
    %v2585 = vld [vmem:[%s7 + $0x78] sm:$0xf]
    %v2586 = vld [vmem:[%s7 + $0x7c] sm:$0xf]
    %v2587 = vld [vmem:[%s7 + $0x80] sm:$0xf]
    %v2588 = vld [vmem:[%s7 + $0x84] sm:$0xf]
    %v2589 = vld [vmem:[%s7 + $0x88] sm:$0xf]
    %v2590 = vld [vmem:[%s7 + $0x8c] sm:$0xf]
    %v2591 = vld [vmem:[%s7 + $0x90] sm:$0xf]
    %v2592 = vld [vmem:[%s7 + $0x94] sm:$0xf]
    %v2593 = vld [vmem:[%s7 + $0x98] sm:$0xf]
    %v2594 = vld [vmem:[%s7 + $0x9c] sm:$0xf]
    %v2595 = vld [vmem:[%s7 + $0xa0] sm:$0xf]
    %v2596 = vld [vmem:[%s7 + $0xa4] sm:$0xf]
    %v2597 = vld [vmem:[%s7 + $0xa8] sm:$0xf]
    %v2598 = vld [vmem:[%s7 + $0xac] sm:$0xf]
    %v2599 = vld [vmem:[%s7 + $0xb0] sm:$0xf]
    %v2600 = vld [vmem:[%s7 + $0xb4] sm:$0xf]
    %v2601 = vld [vmem:[%s7 + $0xb8] sm:$0xf]
    %v2602 = vld [vmem:[%s7 + $0xbc] sm:$0xf]
    %v2603 = vld [vmem:[%s7 + $0xc0] sm:$0xf]
    %v2604 = vld [vmem:[%s7 + $0xc4] sm:$0xf]
    %v2605 = vld [vmem:[%s7 + $0xc8] sm:$0xf]
    %v2606 = vld [vmem:[%s7 + $0xcc] sm:$0xf]
    %v2607 = vld [vmem:[%s7 + $0xd0] sm:$0xf]
    %v2608 = vld [vmem:[%s7 + $0xd4] sm:$0xf]
    %v2609 = vld [vmem:[%s7 + $0xd8] sm:$0xf]
    %v2610 = vld [vmem:[%s7 + $0xdc] sm:$0xf]
    %v2611 = vld [vmem:[%s7 + $0xe0] sm:$0xf]
    %v2612 = vld [vmem:[%s7 + $0xe4] sm:$0xf]
    %v2613 = vld [vmem:[%s7 + $0xe8] sm:$0xf]
    %v2614 = vld [vmem:[%s7 + $0xec] sm:$0xf]
    %v2615 = vld [vmem:[%s7 + $0xf0] sm:$0xf]
    %v2616 = vld [vmem:[%s7 + $0xf4] sm:$0xf]
    %v2617 = vld [vmem:[%s7 + $0xf8] sm:$0xf]
    %v2618 = vld [vmem:[%s7 + $0xfc] sm:$0xf]
    %v2683 = vunpack.c.l.b16 %v2555
    %v2684 = vunpack.c.l.b16 %v2556
    %v2685 = vunpack.c.l.b16 %v2557
    %v2686 = vunpack.c.l.b16 %v2558
    %v2687 = vunpack.c.l.b16 %v2559
    %v2688 = vunpack.c.l.b16 %v2560
    %v2689 = vunpack.c.l.b16 %v2561
    %v2690 = vunpack.c.l.b16 %v2562
    %v2691 = vunpack.c.l.b16 %v2563
    %v2692 = vunpack.c.l.b16 %v2564
    %v2693 = vunpack.c.l.b16 %v2565
    %v2694 = vunpack.c.l.b16 %v2566
    %v2695 = vunpack.c.l.b16 %v2567
    %v2696 = vunpack.c.l.b16 %v2568
    %v2697 = vunpack.c.l.b16 %v2569
    %v2698 = vunpack.c.l.b16 %v2570
    %v2699 = vunpack.c.l.b16 %v2571
    %v2700 = vunpack.c.l.b16 %v2572
    %v2701 = vunpack.c.l.b16 %v2573
    %v2702 = vunpack.c.l.b16 %v2574
    %v2703 = vunpack.c.l.b16 %v2575
    %v2704 = vunpack.c.l.b16 %v2576
    %v2705 = vunpack.c.l.b16 %v2577
    %v2706 = vunpack.c.l.b16 %v2578
    %v2707 = vunpack.c.l.b16 %v2579
    %v2708 = vunpack.c.l.b16 %v2580
    %v2709 = vunpack.c.l.b16 %v2581
    %v2710 = vunpack.c.l.b16 %v2582
    %v2711 = vunpack.c.l.b16 %v2583
    %v2712 = vunpack.c.l.b16 %v2584
    %v2713 = vunpack.c.l.b16 %v2585
    %v2714 = vunpack.c.l.b16 %v2586
    %v2715 = vunpack.c.l.b16 %v2587
    %v2716 = vunpack.c.l.b16 %v2588
    %v2717 = vunpack.c.l.b16 %v2589
    %v2718 = vunpack.c.l.b16 %v2590
    %v2719 = vunpack.c.l.b16 %v2591
    %v2720 = vunpack.c.l.b16 %v2592
    %v2721 = vunpack.c.l.b16 %v2593
    %v2722 = vunpack.c.l.b16 %v2594
    %v2723 = vunpack.c.l.b16 %v2595
    %v2724 = vunpack.c.l.b16 %v2596
    %v2725 = vunpack.c.l.b16 %v2597
    %v2726 = vunpack.c.l.b16 %v2598
    %v2727 = vunpack.c.l.b16 %v2599
    %v2728 = vunpack.c.l.b16 %v2600
    %v2729 = vunpack.c.l.b16 %v2601
    %v2730 = vunpack.c.l.b16 %v2602
    %v2731 = vunpack.c.l.b16 %v2603
    %v2732 = vunpack.c.l.b16 %v2604
    %v2733 = vunpack.c.l.b16 %v2605
    %v2734 = vunpack.c.l.b16 %v2606
    %v2735 = vunpack.c.l.b16 %v2607
    %v2736 = vunpack.c.l.b16 %v2608
    %v2737 = vunpack.c.l.b16 %v2609
    %v2738 = vunpack.c.l.b16 %v2610
    %v2739 = vunpack.c.l.b16 %v2611
    %v2740 = vunpack.c.l.b16 %v2612
    %v2741 = vunpack.c.l.b16 %v2613
    %v2742 = vunpack.c.l.b16 %v2614
    %v2743 = vunpack.c.l.b16 %v2615
    %v2744 = vunpack.c.l.b16 %v2616
    %v2745 = vunpack.c.l.b16 %v2617
    %v2746 = vunpack.c.l.b16 %v2618
    %v2747 = vpack.c.b16 %v2684, %v2683
    %v2748 = vpack.c.b16 %v2686, %v2685
    %v2749 = vpack.c.b16 %v2688, %v2687
    %v2750 = vpack.c.b16 %v2690, %v2689
    %v2751 = vpack.c.b16 %v2692, %v2691
    %v2752 = vpack.c.b16 %v2694, %v2693
    %v2753 = vpack.c.b16 %v2696, %v2695
    %v2754 = vpack.c.b16 %v2698, %v2697
    %v2755 = vpack.c.b16 %v2700, %v2699
    %v2756 = vpack.c.b16 %v2702, %v2701
    %v2757 = vpack.c.b16 %v2704, %v2703
    %v2758 = vpack.c.b16 %v2706, %v2705
    %v2759 = vpack.c.b16 %v2708, %v2707
    %v2760 = vpack.c.b16 %v2710, %v2709
    %v2761 = vpack.c.b16 %v2712, %v2711
    %v2762 = vpack.c.b16 %v2714, %v2713
    %v2763 = vpack.c.b16 %v2716, %v2715
    %v2764 = vpack.c.b16 %v2718, %v2717
    %v2765 = vpack.c.b16 %v2720, %v2719
    %v2766 = vpack.c.b16 %v2722, %v2721
    %v2767 = vpack.c.b16 %v2724, %v2723
    %v2768 = vpack.c.b16 %v2726, %v2725
    %v2769 = vpack.c.b16 %v2728, %v2727
    %v2770 = vpack.c.b16 %v2730, %v2729
    %v2771 = vpack.c.b16 %v2732, %v2731
    %v2772 = vpack.c.b16 %v2734, %v2733
    %v2773 = vpack.c.b16 %v2736, %v2735
    %v2774 = vpack.c.b16 %v2738, %v2737
    %v2775 = vpack.c.b16 %v2740, %v2739
    %v2776 = vpack.c.b16 %v2742, %v2741
    %v2777 = vpack.c.b16 %v2744, %v2743
    %v2778 = vpack.c.b16 %v2746, %v2745
    %2811 = vmatpush.bf16.msra.mxu0 %v2754
    %2812 = vmatpush.bf16.msra.mxu0 %v2753
    %2813 = vmatpush.bf16.msra.mxu0 %v2752
    %2814 = vmatpush.bf16.msra.mxu0 %v2751
    %2815 = vmatpush.bf16.msra.mxu0 %v2750
    %2816 = vmatpush.bf16.msra.mxu0 %v2749
    %2817 = vmatpush.bf16.msra.mxu0 %v2748
    %2818 = vmatpush.bf16.msra.mxu0 %v2747
    %2819 = vmatmul.bf16.gmra.mxu0 %v2551
    %v2820 = vpop.f32.mrf.mxu0
    %v2821 = vadd.f32 0.0, %v2820
    %v2822 = vpop.f32.mrf.mxu0
    %2823 = vdwg.mxu0
    %2824 = vmatpush.bf16.msra.mxu0 %v2762
    %2825 = vmatpush.bf16.msra.mxu0 %v2761
    %2826 = vmatpush.bf16.msra.mxu0 %v2760
    %2827 = vmatpush.bf16.msra.mxu0 %v2759
    %2828 = vmatpush.bf16.msra.mxu0 %v2758
    %2829 = vmatpush.bf16.msra.mxu0 %v2757
    %2830 = vmatpush.bf16.msra.mxu0 %v2756
    %2831 = vmatpush.bf16.msra.mxu0 %v2755
    %2832 = vmatmul.bf16.gmra.mxu0 %v2552
    %v2833 = vpop.f32.mrf.mxu0
    %v2834 = vadd.f32 %v2821, %v2833
    %v2835 = vpop.f32.mrf.mxu0
    %2836 = vdwg.mxu0
    %2837 = vmatpush.bf16.msra.mxu0 %v2770
    %2838 = vmatpush.bf16.msra.mxu0 %v2769
    %2839 = vmatpush.bf16.msra.mxu0 %v2768
    %2840 = vmatpush.bf16.msra.mxu0 %v2767
    %2841 = vmatpush.bf16.msra.mxu0 %v2766
    %2842 = vmatpush.bf16.msra.mxu0 %v2765
    %2843 = vmatpush.bf16.msra.mxu0 %v2764
    %2844 = vmatpush.bf16.msra.mxu0 %v2763
    %2845 = vmatmul.bf16.gmra.mxu0 %v2553
    %v2846 = vpop.f32.mrf.mxu0
    %v2847 = vadd.f32 %v2834, %v2846
    %v2848 = vpop.f32.mrf.mxu0
    %2849 = vdwg.mxu0
    %2850 = vmatpush.bf16.msra.mxu0 %v2778
    %2851 = vmatpush.bf16.msra.mxu0 %v2777
    %2852 = vmatpush.bf16.msra.mxu0 %v2776
    %2853 = vmatpush.bf16.msra.mxu0 %v2775
    %2854 = vmatpush.bf16.msra.mxu0 %v2774
    %2855 = vmatpush.bf16.msra.mxu0 %v2773
    %2856 = vmatpush.bf16.msra.mxu0 %v2772
    %2857 = vmatpush.bf16.msra.mxu0 %v2771
    %2858 = vmatmul.bf16.gmra.mxu0 %v2554
    %v2859 = vpop.f32.mrf.mxu0
    %v2860 = vadd.f32 %v2847, %v2859
    %v2861 = vpop.f32.mrf.mxu0
    %2862 = vdwg.mxu0
    %2863 = vst.msk [vmem:[#allocation7] sm:$0xff] %vm117, %v2860
    %2865 = vrot.lane.b32.xlu0 %v1481, 32
    %v2866 = vpop.permute.xlu0 %2865
    %v2868 = vsel %vm117, %v1470, %v2866
    %vm2869 = vcmask 392192
    %2870 = vst.msk [vmem:[#allocation8] sm:$0xff] %vm2869, %v2868
    // Predicated region
    $region42: #{tpu_custom_call.1} parent=1 // pred_check
      _
    $region43: #{tpu_custom_call.1} parent=1 // pred_check_branch
      %2872 = sbr.rel (0) target = $region45
    $region44: #{tpu_custom_call.1} parent=1 // pred_region
      %2874 = vsyncadd [#allocation4], 0
      %s2876 = sshll.u32 [#allocation7], 4
      %s2877 = int_to_ptr.vmem [resolvable:$true] %s2876
      %s2878 = sshll.u32 %s8, 4
      %s2879 = int_to_ptr.hbm [resolvable:$true] %s2878
      %2881 = dma.vmem_to_hbm [thread:$0]  %s2877, 128, %s2879, [#allocation4]
    $region45: #{tpu_custom_call.1} parent=1 // pred_fallthru
      _
    // Predicated region
    $region46: #{tpu_custom_call.1} parent=1 // pred_check
      _
    $region47: #{tpu_custom_call.1} parent=1 // pred_check_branch
      %2883 = sbr.rel (0) target = $region49
    $region48: #{tpu_custom_call.1} parent=1 // pred_region
      %2885 = vsyncadd [#allocation9], 0
      %s2887 = sshll.u32 [#allocation8], 4
      %s2888 = int_to_ptr.vmem [resolvable:$true] %s2887
      %s2889 = sshll.u32 %s9, 4
      %s2890 = int_to_ptr.hbm [resolvable:$true] %s2889
      %2892 = dma.vmem_to_hbm [thread:$0]  %s2888, 128, %s2890, [#allocation9]
    $region49: #{tpu_custom_call.1} parent=1 // pred_fallthru
      _
    // Predicated region
    $region50: #{tpu_custom_call.1} parent=1 // pred_check
      _
    $region51: #{tpu_custom_call.1} parent=1 // pred_check_branch
      %2894 = sbr.rel (0) target = $region53
    $region52: #{tpu_custom_call.1} parent=1 // pred_region
      %2896 = dma.done [#allocation4], 128
    $region53: #{tpu_custom_call.1} parent=1 // pred_fallthru
      _
    // Predicated region
    $region54: #{tpu_custom_call.1} parent=1 // pred_check
      _
    $region55: #{tpu_custom_call.1} parent=1 // pred_check_branch
      %2898 = sbr.rel (0) target = $region57
    $region56: #{tpu_custom_call.1} parent=1 // pred_region
      %2900 = dma.done [#allocation9], 128
    $region57: #{tpu_custom_call.1} parent=1 // pred_fallthru
      _
    %2901 = vsyncpa [#allocation3], 1
    %2902 = vsyncpa [#allocation6], 1
    %2903 = vsyncpa [#allocation4], 1
    %2904 = vsyncpa [#allocation9], 1

</llo_original>
